<compile_context>
chip_gen: v7x
topology: tpu7x:2x2x1
jax: 0.10.0
libtpu: 0.0.40
codegen_flags: <defaults>
</compile_context>

<pallas_src>
import numpy as np
import jax
import jax.numpy as jnp
from jax import lax
from jax.experimental import pallas as pl
from jax.experimental.pallas import tpu as pltpu

WINDOW_SIZE = 11
SIGMA = 1.5
C1 = (0.01 * 255.0) ** 2
C2 = (0.03 * 255.0) ** 2


def _gaussian_1d(window_size=WINDOW_SIZE, sigma=SIGMA):
    g = np.exp(-((np.arange(window_size) - window_size // 2) ** 2)
               / (2.0 * sigma ** 2))
    return g / g.sum()


_GAUSS_1D = _gaussian_1d()


def _band_matrix(n, n_pad):
    """(n_pad, n_pad) banded Toeplitz Gaussian filter, zeroed outside [0, n).

    K @ X applies the SAME zero-padded 11-tap Gaussian along rows (X @ K along
    columns): the truncated band encodes the zero padding at the true image
    boundary, and the all-zero rows/cols >= n keep padded rows/cols from leaking
    into (or out of) the real pixels.
    """
    r = WINDOW_SIZE // 2
    m = np.zeros((n_pad, n_pad), np.float64)
    for i in range(n):
        for j in range(max(0, i - r), min(n, i + r + 1)):
            m[i, j] = _GAUSS_1D[j - i + r]
    return m


def _pow2_floor(x):
    return 1 << (int(x).bit_length() - 1)


def _ceil_to(x, m):
    return -(-x // m) * m


def _mxu_targets():
    """Lane / sublane packing targets matched to the local TPU's MXU size."""
    try:
        kind = jax.devices()[0].device_kind.lower()
    except Exception:
        kind = ""
    if any(v in kind for v in ("v2", "v3", "v4", "v5")):
        return 128, 128          # 128x128 MXU (v5e and older)
    return 256, 256              # 256-wide/deep MXU (v6e, v7x)


def _slab_factors(NC, H, W, lane_target, sub_target):
    """P images along lanes (P*Wp multiple of 128) and Q along sublanes."""
    if W >= lane_target:
        P, Wp = 1, _ceil_to(W, 128)
    else:
        P = _pow2_floor(lane_target // W)
        Wp = lane_target // P
    Hp = _ceil_to(H, 16)                       # bf16 sublane tile = 16
    Q = max(1, sub_target // Hp)
    Q = min(Q, -(-NC // P))                    # don't allocate >> NC image slots
    S = -(-NC // (P * Q))
    # Prefer >= 2 grid steps when there are >= 2 images (megacore sharding on
    # v7x) as long as lane density (PW % 128 == 0) is preserved.
    while NC >= 2 and S < 2:
        if Q >= 2 and P * (Q // 2) < NC:
            Q //= 2
        elif P >= 2 and ((P // 2) * Wp) % 128 == 0 and (P // 2) * Q < NC:
            P //= 2
        else:
            break
        S = -(-NC // (P * Q))
    return S, Q, P, Hp, Wp


def _pack_slabs(x, S, Q, P, Hp, Wp):
    """(NC, H, W) -> (S, Q*Hp, P*Wp) lane/sublane-dense slabs (zero filled)."""
    NC, H, W = x.shape
    x = jnp.pad(x, ((0, S * Q * P - NC), (0, Hp - H), (0, Wp - W)))
    x = x.reshape(S, Q, P, Hp, Wp)
    # TODO(synk): for P > 1 this relayout costs one extra fused HBM read+write
    # of the inputs before the kernel; a fully fused path would fetch (Q*P,H,W)
    # blocks and do the relayout in VMEM inside the kernel.
    x = jnp.transpose(x, (0, 1, 3, 2, 4))      # no-op when P == 1
    return x.reshape(S, Q * Hp, P * Wp)


def _slot_map(Q, P, Hp, Wp, H, W):
    """Static int32 map: image-slot index for real pixels, big sentinel for pad."""
    m = np.full((Q * Hp, P * Wp), 2 ** 30, np.int32)
    for q in range(Q):
        for p in range(P):
            m[q * Hp:q * Hp + H, p * Wp:p * Wp + W] = q * P + p
    return m


def _split_bf16(x):
    """f32 -> (hi, lo) bf16 pair; hi + lo carries ~16 mantissa bits."""
    hi = x.astype(jnp.bfloat16)
    lo = (x - hi.astype(jnp.float32)).astype(jnp.bfloat16)
    return hi, lo


def _make_kernel(NC, Q, P, QH, PW):
    def kernel(slot_ref, kvh_ref, kvl_ref, kwh_ref, kwl_ref,
               x1_ref, x2_ref, out_ref):
        f32 = jnp.float32
        # Fused affine rescale [-1, 1] -> [0, 255], same op order as the module.
        x1 = (x1_ref[0] + 1.0) * 0.5 * 255.0           # (QH, PW)
        x2 = (x2_ref[0] + 1.0) * 0.5 * 255.0

        # ---- Gaussian blur of the 5 SSIM signals as 2 fused MXU matmuls ----
        # Horizontal pass: stack signals along sublanes, contract over lanes.
        xs = jnp.concatenate([x1, x2, x1 * x1, x2 * x2, x1 * x2], axis=0)
        xs_hi, xs_lo = _split_bf16(xs)                 # (5*QH, PW)
        kwh = kwh_ref[...]
        kwl = kwl_ref[...]
        t = (jnp.dot(xs_hi, kwh, preferred_element_type=f32)
             + jnp.dot(xs_lo, kwh, preferred_element_type=f32)
             + jnp.dot(xs_hi, kwl, preferred_element_type=f32))   # (5*QH, PW)

        # Vertical pass: restack signals along lanes, contract over sublanes.
        u = jnp.concatenate(
            [t[i * QH:(i + 1) * QH, :] for i in range(5)], axis=1)  # (QH, 5*PW)
        u_hi, u_lo = _split_bf16(u)
        kvh = kvh_ref[...]
        kvl = kvl_ref[...]
        v = (jnp.dot(kvh, u_hi, preferred_element_type=f32)
             + jnp.dot(kvl, u_hi, preferred_element_type=f32)
             + jnp.dot(kvh, u_lo, preferred_element_type=f32))      # (QH, 5*PW)

        mu1 = v[:, 0 * PW:1 * PW]
        mu2 = v[:, 1 * PW:2 * PW]
        s11 = v[:, 2 * PW:3 * PW]
        s22 = v[:, 3 * PW:4 * PW]
        s12 = v[:, 4 * PW:5 * PW]

        mu1_sq = mu1 * mu1
        mu2_sq = mu2 * mu2
        mu1_mu2 = mu1 * mu2
        sigma1_sq = s11 - mu1_sq
        sigma2_sq = s22 - mu2_sq
        sigma12 = s12 - mu1_mu2

        num = (2.0 * mu1_mu2 + C1) * (2.0 * sigma12 + C2)
        den = (mu1_sq + mu2_sq + C1) * (sigma1_sq + sigma2_sq + C2)
        r = pl.reciprocal(den, approx=True)
        r = r * (2.0 - den * r)                 # one Newton step (EUP + VPU)
        ssim_map = num * r

        # Drop padded rows/cols and padded image slots, reduce sublanes only;
        # the 128/256 lane partials are summed in the wrapper.
        n_valid = NC - pl.program_id(0) * (Q * P)
        keep = slot_ref[...] < n_valid
        ssim_map = jnp.where(keep, ssim_map, 0.0)
        out_ref[...] = jnp.sum(ssim_map, axis=0, keepdims=True)[None]

    return kernel


def norm_ssim_loss(img1, img2):
    """Equivalent of NORMSSIM(sigma=1.5, size_average=True, channel=C)(img1, img2)."""
    N, C, H, W = img1.shape
    NC = N * C
    x1 = img1.astype(jnp.float32).reshape(NC, H, W)
    x2 = img2.astype(jnp.float32).reshape(NC, H, W)

    lane_t, sub_t = _mxu_targets()
    S, Q, P, Hp, Wp = _slab_factors(NC, H, W, lane_t, sub_t)
    QH, PW = Q * Hp, P * Wp

    x1p = _pack_slabs(x1, S, Q, P, Hp, Wp)
    x2p = _pack_slabs(x2, S, Q, P, Hp, Wp)

    # Separable Gaussian as banded, block-diagonal (per packed image) matrices,
    # pre-split into bf16 hi/lo for the 3-pass MXU matmuls.
    kv = jnp.asarray(np.kron(np.eye(Q), _band_matrix(H, Hp)), jnp.float32)
    kw = jnp.asarray(np.kron(np.eye(P), _band_matrix(W, Wp)), jnp.float32)
    kv_hi, kv_lo = _split_bf16(kv)
    kw_hi, kw_lo = _split_bf16(kw)
    slot = jnp.asarray(_slot_map(Q, P, Hp, Wp, H, W))

    kernel = _make_kernel(NC, Q, P, QH, PW)

    # TODO(synk): for very large images (H or W >= ~1024) the dense band matrices
    # are O(n^2) mostly-zero work; switch to row-stripe tiling with a 5-row halo
    # and a block-banded kv.
    # TODO(synk): when S is large, carry several slabs per grid step (block
    # (T, QH, PW) + unrolled inner loop) to amortize per-step overhead.
    out = pl.pallas_call(
        kernel,
        out_shape=jax.ShapeDtypeStruct((S, 1, PW), jnp.float32),
        grid_spec=pltpu.PrefetchScalarGridSpec(
            num_scalar_prefetch=0,
            grid=(S,),
            in_specs=[
                pl.BlockSpec((QH, PW), lambda s: (0, 0)),      # slot map
                pl.BlockSpec((QH, QH), lambda s: (0, 0)),      # kv hi
                pl.BlockSpec((QH, QH), lambda s: (0, 0)),      # kv lo
                pl.BlockSpec((PW, PW), lambda s: (0, 0)),      # kw hi
                pl.BlockSpec((PW, PW), lambda s: (0, 0)),      # kw lo
                pl.BlockSpec((1, QH, PW), lambda s: (s, 0, 0)),
                pl.BlockSpec((1, QH, PW), lambda s: (s, 0, 0)),
            ],
            out_specs=pl.BlockSpec((1, 1, PW), lambda s: (s, 0, 0)),
        ),
        compiler_params=pltpu.CompilerParams(
            dimension_semantics=("parallel",),
            vmem_limit_bytes=32 * 1024 * 1024),
    )(slot, kv_hi, kv_lo, kw_hi, kw_lo, x1p, x2p)

    ssim_sum = jnp.sum(out)
    return 1.0 - ssim_sum / jnp.float32(NC * H * W)


def _reference_loss(img1, img2):
    """Pure-JAX reference mirroring the PyTorch t_ssim path."""
    N, C, H, W = img1.shape
    pad = WINDOW_SIZE // 2
    x1 = (img1.astype(jnp.float32) + 1.0) / 2.0 * 255.0
    x2 = (img2.astype(jnp.float32) + 1.0) / 2.0 * 255.0
    g = jnp.asarray(_GAUSS_1D, jnp.float32)
    win = jnp.outer(g, g)[None, None]                     # (1,1,11,11)

    def conv(x):
        xr = x.reshape(N * C, 1, H, W)
        return lax.conv_general_dilated(
            xr, win, (1, 1), [(pad, pad), (pad, pad)],
            dimension_numbers=("NCHW", "OIHW", "NCHW"),
            precision=lax.Precision.HIGHEST)

    mu1, mu2 = conv(x1), conv(x2)
    s11, s22, s12 = conv(x1 * x1), conv(x2 * x2), conv(x1 * x2)
    mu1_sq, mu2_sq, mu1_mu2 = mu1 * mu1, mu2 * mu2, mu1 * mu2
    sigma1_sq, sigma2_sq, sigma12 = s11 - mu1_sq, s22 - mu2_sq, s12 - mu1_mu2
    ssim_map = ((2 * mu1_mu2 + C1) * (2 * sigma12 + C2)) / (
        (mu1_sq + mu2_sq + C1) * (sigma1_sq + sigma2_sq + C2))
    return 1.0 - jnp.mean(ssim_map)


if __name__ == "__main__":
    key = jax.random.PRNGKey(0)
    k1, k2, k3, k4 = jax.random.split(key, 4)
    loss_fn = jax.jit(norm_ssim_loss)

    # Config 1: NORMSSIM default channel=1, small square images.
    a1 = jax.random.uniform(k1, (2, 1, 16, 16), jnp.float32, minval=-1.0, maxval=1.0)
    b1 = jax.random.uniform(k2, (2, 1, 16, 16), jnp.float32, minval=-1.0, maxval=1.0)
    loss1 = jax.block_until_ready(loss_fn(a1, b1))
    ref1 = jax.block_until_ready(_reference_loss(a1, b1))
    assert jnp.isfinite(loss1), "non-finite loss"
    assert abs(float(loss1) - float(ref1)) < 2e-3, (float(loss1), float(ref1))

    # Config 2: non-square images, channel=3; exercises height/width padding,
    # lane packing, a partially filled slab and the >=2-grid-step split.
    a2 = jax.random.uniform(k3, (2, 3, 20, 24), jnp.float32, minval=-1.0, maxval=1.0)
    b2 = jax.random.uniform(k4, (2, 3, 20, 24), jnp.float32, minval=-1.0, maxval=1.0)
    loss2 = jax.block_until_ready(loss_fn(a2, b2))
    ref2 = jax.block_until_ready(_reference_loss(a2, b2))
    assert jnp.isfinite(loss2), "non-finite loss"
    assert abs(float(loss2) - float(ref2)) < 2e-3, (float(loss2), float(ref2))

    print("KERNEL_OK")
</pallas_src>

<mosaic_0001>
module attributes {stable_mosaic.version = 11 : i64} {
  func.func @kernel(%arg0: i32, %arg1: memref<16x256xi32, #tpu.memory_space<vmem>>, %arg2: memref<16x16xbf16, #tpu.memory_space<vmem>>, %arg3: memref<16x16xbf16, #tpu.memory_space<vmem>>, %arg4: memref<256x256xbf16, #tpu.memory_space<vmem>>, %arg5: memref<256x256xbf16, #tpu.memory_space<vmem>>, %arg6: memref<1x16x256xf32, #tpu.memory_space<vmem>>, %arg7: memref<1x16x256xf32, #tpu.memory_space<vmem>>, %arg8: memref<1x1x256xf32, #tpu.memory_space<vmem>>) attributes {dimension_semantics = [#tpu.dimension_semantics<parallel>], iteration_bounds = array<i64: 1>, scalar_prefetch = 0 : i64, scratch_operands = 0 : i64, tpu.core_type = #tpu.core_type<tc>, window_params = [{pipeline_mode = #tpu.pipeline_mode<synchronous>, transform_indices = @transform_0, window_bounds = array<i64: 16, 256>}, {pipeline_mode = #tpu.pipeline_mode<synchronous>, transform_indices = @transform_1, window_bounds = array<i64: 16, 16>}, {pipeline_mode = #tpu.pipeline_mode<synchronous>, transform_indices = @transform_2, window_bounds = array<i64: 16, 16>}, {pipeline_mode = #tpu.pipeline_mode<synchronous>, transform_indices = @transform_3, window_bounds = array<i64: 256, 256>}, {pipeline_mode = #tpu.pipeline_mode<synchronous>, transform_indices = @transform_4, window_bounds = array<i64: 256, 256>}, {transform_indices = @transform_5, window_bounds = array<i64: 1, 16, 256>}, {transform_indices = @transform_6, window_bounds = array<i64: 1, 16, 256>}, {transform_indices = @transform_7, window_bounds = array<i64: 1, 1, 256>}]} {
    %c0 = arith.constant 0 : index
    %c0_0 = arith.constant 0 : index
    %c0_1 = arith.constant 0 : index
    %0 = vector.load %arg6[%c0, %c0_0, %c0_1] : memref<1x16x256xf32, #tpu.memory_space<vmem>>, vector<1x16x256xf32>
    %1 = vector.shape_cast %0 : vector<1x16x256xf32> to vector<16x256xf32>
    %cst = arith.constant 1.000000e+00 : f32
    %2 = vector.broadcast %cst : f32 to vector<16x256xf32>
    %3 = arith.addf %1, %2 : vector<16x256xf32>
    %cst_2 = arith.constant 5.000000e-01 : f32
    %4 = vector.broadcast %cst_2 : f32 to vector<16x256xf32>
    %5 = arith.mulf %3, %4 : vector<16x256xf32>
    %cst_3 = arith.constant 2.550000e+02 : f32
    %6 = vector.broadcast %cst_3 : f32 to vector<16x256xf32>
    %7 = arith.mulf %5, %6 : vector<16x256xf32>
    %c0_4 = arith.constant 0 : index
    %c0_5 = arith.constant 0 : index
    %c0_6 = arith.constant 0 : index
    %8 = vector.load %arg7[%c0_4, %c0_5, %c0_6] : memref<1x16x256xf32, #tpu.memory_space<vmem>>, vector<1x16x256xf32>
    %9 = vector.shape_cast %8 : vector<1x16x256xf32> to vector<16x256xf32>
    %cst_7 = arith.constant 1.000000e+00 : f32
    %10 = vector.broadcast %cst_7 : f32 to vector<16x256xf32>
    %11 = arith.addf %9, %10 : vector<16x256xf32>
    %cst_8 = arith.constant 5.000000e-01 : f32
    %12 = vector.broadcast %cst_8 : f32 to vector<16x256xf32>
    %13 = arith.mulf %11, %12 : vector<16x256xf32>
    %cst_9 = arith.constant 2.550000e+02 : f32
    %14 = vector.broadcast %cst_9 : f32 to vector<16x256xf32>
    %15 = arith.mulf %13, %14 : vector<16x256xf32>
    %16 = arith.mulf %7, %7 : vector<16x256xf32>
    %17 = arith.mulf %15, %15 : vector<16x256xf32>
    %18 = arith.mulf %7, %15 : vector<16x256xf32>
    %19 = tpu.concatenate %7, %15, %16, %17, %18 in 0 : vector<16x256xf32>, vector<16x256xf32>, vector<16x256xf32>, vector<16x256xf32>, vector<16x256xf32> -> vector<80x256xf32>
    %20 = arith.truncf %19 : vector<80x256xf32> to vector<80x256xbf16>
    %21 = arith.extf %20 : vector<80x256xbf16> to vector<80x256xf32>
    %22 = arith.subf %19, %21 : vector<80x256xf32>
    %23 = arith.truncf %22 : vector<80x256xf32> to vector<80x256xbf16>
    %c0_10 = arith.constant 0 : index
    %c0_11 = arith.constant 0 : index
    %24 = vector.load %arg4[%c0_10, %c0_11] : memref<256x256xbf16, #tpu.memory_space<vmem>>, vector<256x256xbf16>
    %c0_12 = arith.constant 0 : index
    %c0_13 = arith.constant 0 : index
    %25 = vector.load %arg5[%c0_12, %c0_13] : memref<256x256xbf16, #tpu.memory_space<vmem>>, vector<256x256xbf16>
    %cst_14 = arith.constant dense<0.000000e+00> : vector<80x256xf32>
    %26 = tpu.matmul %20, %24, %cst_14 {dimension_numbers = #tpu.dot_dimension_numbers<[1], [0], [0], [1], [0, 0, 1, 1], [], []>} : vector<80x256xbf16>, vector<256x256xbf16>, vector<80x256xf32> -> vector<80x256xf32>
    %cst_15 = arith.constant dense<0.000000e+00> : vector<80x256xf32>
    %27 = tpu.matmul %23, %24, %cst_15 {dimension_numbers = #tpu.dot_dimension_numbers<[1], [0], [0], [1], [0, 0, 1, 1], [], []>} : vector<80x256xbf16>, vector<256x256xbf16>, vector<80x256xf32> -> vector<80x256xf32>
    %28 = arith.addf %26, %27 : vector<80x256xf32>
    %cst_16 = arith.constant dense<0.000000e+00> : vector<80x256xf32>
    %29 = tpu.matmul %20, %25, %cst_16 {dimension_numbers = #tpu.dot_dimension_numbers<[1], [0], [0], [1], [0, 0, 1, 1], [], []>} : vector<80x256xbf16>, vector<256x256xbf16>, vector<80x256xf32> -> vector<80x256xf32>
    %30 = arith.addf %28, %29 : vector<80x256xf32>
    %31 = vector.extract_strided_slice %30 {offsets = [0, 0], sizes = [16, 256], strides = [1, 1]} : vector<80x256xf32> to vector<16x256xf32>
    %32 = vector.extract_strided_slice %30 {offsets = [16, 0], sizes = [16, 256], strides = [1, 1]} : vector<80x256xf32> to vector<16x256xf32>
    %33 = vector.extract_strided_slice %30 {offsets = [32, 0], sizes = [16, 256], strides = [1, 1]} : vector<80x256xf32> to vector<16x256xf32>
    %34 = vector.extract_strided_slice %30 {offsets = [48, 0], sizes = [16, 256], strides = [1, 1]} : vector<80x256xf32> to vector<16x256xf32>
    %35 = vector.extract_strided_slice %30 {offsets = [64, 0], sizes = [16, 256], strides = [1, 1]} : vector<80x256xf32> to vector<16x256xf32>
    %36 = tpu.concatenate %31, %32, %33, %34, %35 in 1 : vector<16x256xf32>, vector<16x256xf32>, vector<16x256xf32>, vector<16x256xf32>, vector<16x256xf32> -> vector<16x1280xf32>
    %37 = arith.truncf %36 : vector<16x1280xf32> to vector<16x1280xbf16>
    %38 = arith.extf %37 : vector<16x1280xbf16> to vector<16x1280xf32>
    %39 = arith.subf %36, %38 : vector<16x1280xf32>
    %40 = arith.truncf %39 : vector<16x1280xf32> to vector<16x1280xbf16>
    %c0_17 = arith.constant 0 : index
    %c0_18 = arith.constant 0 : index
    %41 = vector.load %arg2[%c0_17, %c0_18] : memref<16x16xbf16, #tpu.memory_space<vmem>>, vector<16x16xbf16>
    %c0_19 = arith.constant 0 : index
    %c0_20 = arith.constant 0 : index
    %42 = vector.load %arg3[%c0_19, %c0_20] : memref<16x16xbf16, #tpu.memory_space<vmem>>, vector<16x16xbf16>
    %cst_21 = arith.constant dense<0.000000e+00> : vector<16x1280xf32>
    %43 = tpu.matmul %41, %37, %cst_21 {dimension_numbers = #tpu.dot_dimension_numbers<[1], [0], [0], [1], [0, 0, 1, 1], [], []>} : vector<16x16xbf16>, vector<16x1280xbf16>, vector<16x1280xf32> -> vector<16x1280xf32>
    %cst_22 = arith.constant dense<0.000000e+00> : vector<16x1280xf32>
    %44 = tpu.matmul %42, %37, %cst_22 {dimension_numbers = #tpu.dot_dimension_numbers<[1], [0], [0], [1], [0, 0, 1, 1], [], []>} : vector<16x16xbf16>, vector<16x1280xbf16>, vector<16x1280xf32> -> vector<16x1280xf32>
    %45 = arith.addf %43, %44 : vector<16x1280xf32>
    %cst_23 = arith.constant dense<0.000000e+00> : vector<16x1280xf32>
    %46 = tpu.matmul %41, %40, %cst_23 {dimension_numbers = #tpu.dot_dimension_numbers<[1], [0], [0], [1], [0, 0, 1, 1], [], []>} : vector<16x16xbf16>, vector<16x1280xbf16>, vector<16x1280xf32> -> vector<16x1280xf32>
    %47 = arith.addf %45, %46 : vector<16x1280xf32>
    %48 = vector.extract_strided_slice %47 {offsets = [0, 0], sizes = [16, 256], strides = [1, 1]} : vector<16x1280xf32> to vector<16x256xf32>
    %49 = vector.extract_strided_slice %47 {offsets = [0, 256], sizes = [16, 256], strides = [1, 1]} : vector<16x1280xf32> to vector<16x256xf32>
    %50 = vector.extract_strided_slice %47 {offsets = [0, 512], sizes = [16, 256], strides = [1, 1]} : vector<16x1280xf32> to vector<16x256xf32>
    %51 = vector.extract_strided_slice %47 {offsets = [0, 768], sizes = [16, 256], strides = [1, 1]} : vector<16x1280xf32> to vector<16x256xf32>
    %52 = vector.extract_strided_slice %47 {offsets = [0, 1024], sizes = [16, 256], strides = [1, 1]} : vector<16x1280xf32> to vector<16x256xf32>
    %53 = arith.mulf %48, %48 : vector<16x256xf32>
    %54 = arith.mulf %49, %49 : vector<16x256xf32>
    %55 = arith.mulf %48, %49 : vector<16x256xf32>
    %56 = arith.subf %50, %53 : vector<16x256xf32>
    %57 = arith.subf %51, %54 : vector<16x256xf32>
    %58 = arith.subf %52, %55 : vector<16x256xf32>
    %cst_24 = arith.constant 2.000000e+00 : f32
    %59 = vector.broadcast %cst_24 : f32 to vector<16x256xf32>
    %60 = arith.mulf %59, %55 : vector<16x256xf32>
    %cst_25 = arith.constant 6.502500e+00 : f32
    %61 = vector.broadcast %cst_25 : f32 to vector<16x256xf32>
    %62 = arith.addf %60, %61 : vector<16x256xf32>
    %cst_26 = arith.constant 2.000000e+00 : f32
    %63 = vector.broadcast %cst_26 : f32 to vector<16x256xf32>
    %64 = arith.mulf %63, %58 : vector<16x256xf32>
    %cst_27 = arith.constant 5.852250e+01 : f32
    %65 = vector.broadcast %cst_27 : f32 to vector<16x256xf32>
    %66 = arith.addf %64, %65 : vector<16x256xf32>
    %67 = arith.mulf %62, %66 : vector<16x256xf32>
    %68 = arith.addf %53, %54 : vector<16x256xf32>
    %cst_28 = arith.constant 6.502500e+00 : f32
    %69 = vector.broadcast %cst_28 : f32 to vector<16x256xf32>
    %70 = arith.addf %68, %69 : vector<16x256xf32>
    %71 = arith.addf %56, %57 : vector<16x256xf32>
    %cst_29 = arith.constant 5.852250e+01 : f32
    %72 = vector.broadcast %cst_29 : f32 to vector<16x256xf32>
    %73 = arith.addf %71, %72 : vector<16x256xf32>
    %74 = arith.mulf %70, %73 : vector<16x256xf32>
    %75 = tpu.reciprocal %74 {approx = true} : vector<16x256xf32> -> vector<16x256xf32>
    %76 = arith.mulf %74, %75 : vector<16x256xf32>
    %cst_30 = arith.constant 2.000000e+00 : f32
    %77 = vector.broadcast %cst_30 : f32 to vector<16x256xf32>
    %78 = arith.subf %77, %76 : vector<16x256xf32>
    %79 = arith.mulf %75, %78 : vector<16x256xf32>
    %80 = arith.mulf %67, %79 : vector<16x256xf32>
    %c16_i32 = arith.constant 16 : i32
    %81 = arith.muli %arg0, %c16_i32 : i32
    %c2_i32 = arith.constant 2 : i32
    %82 = arith.subi %c2_i32, %81 : i32
    %c0_31 = arith.constant 0 : index
    %c0_32 = arith.constant 0 : index
    %83 = vector.load %arg1[%c0_31, %c0_32] : memref<16x256xi32, #tpu.memory_space<vmem>>, vector<16x256xi32>
    %84 = vector.broadcast %82 : i32 to vector<16x256xi32>
    %85 = arith.cmpi slt, %83, %84 : vector<16x256xi32>
    %cst_33 = arith.constant 0.000000e+00 : f32
    %86 = vector.broadcast %cst_33 : f32 to vector<16x256xf32>
    %87 = arith.select %85, %80, %86 : vector<16x256xi1>, vector<16x256xf32>
    %cst_34 = arith.constant dense<0.000000e+00> : vector<256xf32>
    %88 = vector.multi_reduction <add>, %87, %cst_34 [0] : vector<16x256xf32> to vector<256xf32>
    %89 = vector.shape_cast %88 : vector<256xf32> to vector<1x256xf32>
    %90 = vector.shape_cast %89 : vector<1x256xf32> to vector<1x1x256xf32>
    %c0_35 = arith.constant 0 : index
    %c0_36 = arith.constant 0 : index
    %c0_37 = arith.constant 0 : index
    %91 = vector.load %arg8[%c0_35, %c0_36, %c0_37] : memref<1x1x256xf32, #tpu.memory_space<vmem>>, vector<1x1x256xf32>
    tpu.vector_store %arg8[%c0_35, %c0_36, %c0_37], %90 {strides = array<i32>} : memref<1x1x256xf32, #tpu.memory_space<vmem>>, vector<1x1x256xf32>,
    return
  }
  func.func @transform_0(%arg0: i32) -> (i32, i32) {
    %c0_i32 = arith.constant 0 : i32
    %c0_i32_0 = arith.constant 0 : i32
    %c0_i32_1 = arith.constant 0 : i32
    return %c0_i32, %c0_i32_0 : i32, i32
  }
  func.func @transform_1(%arg0: i32) -> (i32, i32) {
    %c0_i32 = arith.constant 0 : i32
    %c0_i32_0 = arith.constant 0 : i32
    %c0_i32_1 = arith.constant 0 : i32
    return %c0_i32, %c0_i32_0 : i32, i32
  }
  func.func @transform_2(%arg0: i32) -> (i32, i32) {
    %c0_i32 = arith.constant 0 : i32
    %c0_i32_0 = arith.constant 0 : i32
    %c0_i32_1 = arith.constant 0 : i32
    return %c0_i32, %c0_i32_0 : i32, i32
  }
  func.func @transform_3(%arg0: i32) -> (i32, i32) {
    %c0_i32 = arith.constant 0 : i32
    %c0_i32_0 = arith.constant 0 : i32
    %c0_i32_1 = arith.constant 0 : i32
    return %c0_i32, %c0_i32_0 : i32, i32
  }
  func.func @transform_4(%arg0: i32) -> (i32, i32) {
    %c0_i32 = arith.constant 0 : i32
    %c0_i32_0 = arith.constant 0 : i32
    %c0_i32_1 = arith.constant 0 : i32
    return %c0_i32, %c0_i32_0 : i32, i32
  }
  func.func @transform_5(%arg0: i32) -> (i32, i32, i32) {
    %c0_i32 = arith.constant 0 : i32
    %c0_i32_0 = arith.constant 0 : i32
    %c0_i32_1 = arith.constant 0 : i32
    return %arg0, %c0_i32, %c0_i32_0 : i32, i32, i32
  }
  func.func @transform_6(%arg0: i32) -> (i32, i32, i32) {
    %c0_i32 = arith.constant 0 : i32
    %c0_i32_0 = arith.constant 0 : i32
    %c0_i32_1 = arith.constant 0 : i32
    return %arg0, %c0_i32, %c0_i32_0 : i32, i32, i32
  }
  func.func @transform_7(%arg0: i32) -> (i32, i32, i32) {
    %c0_i32 = arith.constant 0 : i32
    %c0_i32_0 = arith.constant 0 : i32
    %c0_i32_1 = arith.constant 0 : i32
    return %arg0, %c0_i32, %c0_i32_0 : i32, i32, i32
  }
}

</mosaic_0001>

<llo_original>
// kernel: norm_ssim_loss.1
$region0: #{norm_ssim_loss.1}
  #allocation0 [shape = 'u32[]', space=smem, size = 0x4, offset = 0x4, fixed_abs, tag = 'smem constant byte address 0x4 - core index']
  #allocation1 [shape = 'u32[144,128]{1,0:T(1,128)}', space=vmem, size = 0x12000, scoped, tag = 'internal scratch']
  %s0 = inlined_call_operand.vmem [shape: s32[16,256], index: 0, kind: input, shape index: {}]
  %s1 = inlined_call_operand.vmem [shape: bf16[16,16], index: 1, kind: input, shape index: {}]
  %s2 = inlined_call_operand.vmem [shape: bf16[16,16], index: 2, kind: input, shape index: {}]
  %s3 = inlined_call_operand.vmem [shape: bf16[256,256], index: 3, kind: input, shape index: {}]
  %s4 = inlined_call_operand.vmem [shape: bf16[256,256], index: 4, kind: input, shape index: {}]
  %s5 = inlined_call_operand.vmem [shape: f32[1,16,256], index: 5, kind: input, shape index: {}]
  %s6 = inlined_call_operand.vmem [shape: f32[1,16,256], index: 6, kind: input, shape index: {}]
  %s7 = inlined_call_operand.vmem [shape: f32[1,1,256], index: 7, kind: output, shape index: {}]
  %s8 = sld [smem:[#allocation0]]
  $region38: #{norm_ssim_loss.1} parent=0
    _
  %s10 = ssub.s32 1, %s8
  %s11 = scalar_select 0, %s10, %s8
  // Predicated region
  $region2: #{norm_ssim_loss.1} parent=0 // pred_check
    _
  $region3: #{norm_ssim_loss.1} parent=0 // pred_check_branch
    %13 = sbr.rel (0) target = $region5
  $region4: #{norm_ssim_loss.1} parent=0 // pred_region
    _
  $region5: #{norm_ssim_loss.1} parent=0 // pred_fallthru
    _
  // Predicated region
  $region6: #{norm_ssim_loss.1} parent=0 // pred_check
    _
  $region7: #{norm_ssim_loss.1} parent=0 // pred_check_branch
    %15 = sbr.rel (0) target = $region9
  $region8: #{norm_ssim_loss.1} parent=0 // pred_region
    _
  $region9: #{norm_ssim_loss.1} parent=0 // pred_fallthru
    _
  // Predicated region
  $region10: #{norm_ssim_loss.1} parent=0 // pred_check
    _
  $region11: #{norm_ssim_loss.1} parent=0 // pred_check_branch
    %17 = sbr.rel (0) target = $region13
  $region12: #{norm_ssim_loss.1} parent=0 // pred_region
    _
  $region13: #{norm_ssim_loss.1} parent=0 // pred_fallthru
    _
  // Predicated region
  $region14: #{norm_ssim_loss.1} parent=0 // pred_check
    _
  $region15: #{norm_ssim_loss.1} parent=0 // pred_check_branch
    %19 = sbr.rel (0) target = $region17
  $region16: #{norm_ssim_loss.1} parent=0 // pred_region
    _
  $region17: #{norm_ssim_loss.1} parent=0 // pred_fallthru
    _
  // Predicated region
  $region18: #{norm_ssim_loss.1} parent=0 // pred_check
    _
  $region19: #{norm_ssim_loss.1} parent=0 // pred_check_branch
    %21 = sbr.rel (0) target = $region21
  $region20: #{norm_ssim_loss.1} parent=0 // pred_region
    _
  $region21: #{norm_ssim_loss.1} parent=0 // pred_fallthru
    _
  // Predicated region
  $region22: #{norm_ssim_loss.1} parent=0 // pred_check
    _
  $region23: #{norm_ssim_loss.1} parent=0 // pred_check_branch
    %23 = sbr.rel (0) target = $region25
  $region24: #{norm_ssim_loss.1} parent=0 // pred_region
    _
  $region25: #{norm_ssim_loss.1} parent=0 // pred_fallthru
    _
  // Predicated region
  $region26: #{norm_ssim_loss.1} parent=0 // pred_check
    _
  $region27: #{norm_ssim_loss.1} parent=0 // pred_check_branch
    %25 = sbr.rel (0) target = $region29
  $region28: #{norm_ssim_loss.1} parent=0 // pred_region
    _
  $region29: #{norm_ssim_loss.1} parent=0 // pred_fallthru
    _
  %v27 = vld [vmem:[%s5] sm:$0xff]
  %v28 = vld [vmem:[%s5 + $0x8] sm:$0xff]
  %v29 = vld [vmem:[%s5 + $0x10] sm:$0xff]
  %v30 = vld [vmem:[%s5 + $0x18] sm:$0xff]
  %v31 = vadd.f32 %v27, 1.0
  %v32 = vadd.f32 %v28, 1.0
  %v33 = vadd.f32 %v29, 1.0
  %v34 = vadd.f32 %v30, 1.0
  %v35 = vmul.f32 %v31, 0.5
  %v36 = vmul.f32 %v32, 0.5
  %v37 = vmul.f32 %v33, 0.5
  %v38 = vmul.f32 %v34, 0.5
  %v39 = vmul.f32 %v35, 255.0
  %v40 = vmul.f32 %v36, 255.0
  %v41 = vmul.f32 %v37, 255.0
  %v42 = vmul.f32 %v38, 255.0
  %v43 = vld [vmem:[%s6] sm:$0xff]
  %v44 = vld [vmem:[%s6 + $0x8] sm:$0xff]
  %v45 = vld [vmem:[%s6 + $0x10] sm:$0xff]
  %v46 = vld [vmem:[%s6 + $0x18] sm:$0xff]
  %v47 = vadd.f32 %v43, 1.0
  %v48 = vadd.f32 %v44, 1.0
  %v49 = vadd.f32 %v45, 1.0
  %v50 = vadd.f32 %v46, 1.0
  %v51 = vmul.f32 %v47, 0.5
  %v52 = vmul.f32 %v48, 0.5
  %v53 = vmul.f32 %v49, 0.5
  %v54 = vmul.f32 %v50, 0.5
  %v55 = vmul.f32 %v51, 255.0
  %v56 = vmul.f32 %v52, 255.0
  %v57 = vmul.f32 %v53, 255.0
  %v58 = vmul.f32 %v54, 255.0
  %v59 = vmul.f32 %v39, %v39
  %v60 = vmul.f32 %v40, %v40
  %v61 = vmul.f32 %v41, %v41
  %v62 = vmul.f32 %v42, %v42
  %v63 = vmul.f32 %v55, %v55
  %v64 = vmul.f32 %v56, %v56
  %v65 = vmul.f32 %v57, %v57
  %v66 = vmul.f32 %v58, %v58
  %v67 = vmul.f32 %v39, %v55
  %v68 = vmul.f32 %v40, %v56
  %v69 = vmul.f32 %v41, %v57
  %v70 = vmul.f32 %v42, %v58
  %v71 = vpack.c.bf16 %v41, %v39
  %v72 = vpack.c.bf16 %v42, %v40
  %v73 = vpack.c.bf16 %v57, %v55
  %v74 = vpack.c.bf16 %v58, %v56
  %v75 = vpack.c.bf16 %v61, %v59
  %v76 = vpack.c.bf16 %v62, %v60
  %v77 = vpack.c.bf16 %v65, %v63
  %v78 = vpack.c.bf16 %v66, %v64
  %v79 = vpack.c.bf16 %v69, %v67
  %v80 = vpack.c.bf16 %v70, %v68
  %v81 = vunpack.c.l.bf16 %v71
  %v82 = vunpack.c.l.bf16 %v72
  %v83 = vunpack.c.h.bf16 %v71
  %v84 = vunpack.c.h.bf16 %v72
  %v85 = vunpack.c.l.bf16 %v73
  %v86 = vunpack.c.l.bf16 %v74
  %v87 = vunpack.c.h.bf16 %v73
  %v88 = vunpack.c.h.bf16 %v74
  %v89 = vunpack.c.l.bf16 %v75
  %v90 = vunpack.c.l.bf16 %v76
  %v91 = vunpack.c.h.bf16 %v75
  %v92 = vunpack.c.h.bf16 %v76
  %v93 = vunpack.c.l.bf16 %v77
  %v94 = vunpack.c.l.bf16 %v78
  %v95 = vunpack.c.h.bf16 %v77
  %v96 = vunpack.c.h.bf16 %v78
  %v97 = vunpack.c.l.bf16 %v79
  %v98 = vunpack.c.l.bf16 %v80
  %v99 = vunpack.c.h.bf16 %v79
  %v100 = vunpack.c.h.bf16 %v80
  %v101 = vsub.f32 %v39, %v81
  %v102 = vsub.f32 %v40, %v82
  %v103 = vsub.f32 %v41, %v83
  %v104 = vsub.f32 %v42, %v84
  %v105 = vsub.f32 %v55, %v85
  %v106 = vsub.f32 %v56, %v86
  %v107 = vsub.f32 %v57, %v87
  %v108 = vsub.f32 %v58, %v88
  %v109 = vsub.f32 %v59, %v89
  %v110 = vsub.f32 %v60, %v90
  %v111 = vsub.f32 %v61, %v91
  %v112 = vsub.f32 %v62, %v92
  %v113 = vsub.f32 %v63, %v93
  %v114 = vsub.f32 %v64, %v94
  %v115 = vsub.f32 %v65, %v95
  %v116 = vsub.f32 %v66, %v96
  %v117 = vsub.f32 %v67, %v97
  %v118 = vsub.f32 %v68, %v98
  %v119 = vsub.f32 %v69, %v99
  %v120 = vsub.f32 %v70, %v100
  %v121 = vpack.c.bf16 %v103, %v101
  %v122 = vpack.c.bf16 %v104, %v102
  %v123 = vpack.c.bf16 %v107, %v105
  %v124 = vpack.c.bf16 %v108, %v106
  %v125 = vpack.c.bf16 %v111, %v109
  %v126 = vpack.c.bf16 %v112, %v110
  %v127 = vpack.c.bf16 %v115, %v113
  %v128 = vpack.c.bf16 %v116, %v114
  %v129 = vpack.c.bf16 %v119, %v117
  %v130 = vpack.c.bf16 %v120, %v118
  %v131 = vld [vmem:[%s3] sm:$0xff]
  %v132 = vld [vmem:[%s3 + $0x8] sm:$0xff]
  %v133 = vld [vmem:[%s3 + $0x10] sm:$0xff]
  %v134 = vld [vmem:[%s3 + $0x18] sm:$0xff]
  %v135 = vld [vmem:[%s3 + $0x20] sm:$0xff]
  %v136 = vld [vmem:[%s3 + $0x28] sm:$0xff]
  %v137 = vld [vmem:[%s3 + $0x30] sm:$0xff]
  %v138 = vld [vmem:[%s3 + $0x38] sm:$0xff]
  %v139 = vld [vmem:[%s3 + $0x40] sm:$0xff]
  %v140 = vld [vmem:[%s3 + $0x48] sm:$0xff]
  %v141 = vld [vmem:[%s3 + $0x50] sm:$0xff]
  %v142 = vld [vmem:[%s3 + $0x58] sm:$0xff]
  %v143 = vld [vmem:[%s3 + $0x60] sm:$0xff]
  %v144 = vld [vmem:[%s3 + $0x68] sm:$0xff]
  %v145 = vld [vmem:[%s3 + $0x70] sm:$0xff]
  %v146 = vld [vmem:[%s3 + $0x78] sm:$0xff]
  %v147 = vld [vmem:[%s3 + $0x80] sm:$0xff]
  %v148 = vld [vmem:[%s3 + $0x88] sm:$0xff]
  %v149 = vld [vmem:[%s3 + $0x90] sm:$0xff]
  %v150 = vld [vmem:[%s3 + $0x98] sm:$0xff]
  %v151 = vld [vmem:[%s3 + $0xa0] sm:$0xff]
  %v152 = vld [vmem:[%s3 + $0xa8] sm:$0xff]
  %v153 = vld [vmem:[%s3 + $0xb0] sm:$0xff]
  %v154 = vld [vmem:[%s3 + $0xb8] sm:$0xff]
  %v155 = vld [vmem:[%s3 + $0xc0] sm:$0xff]
  %v156 = vld [vmem:[%s3 + $0xc8] sm:$0xff]
  %v157 = vld [vmem:[%s3 + $0xd0] sm:$0xff]
  %v158 = vld [vmem:[%s3 + $0xd8] sm:$0xff]
  %v159 = vld [vmem:[%s3 + $0xe0] sm:$0xff]
  %v160 = vld [vmem:[%s3 + $0xe8] sm:$0xff]
  %v161 = vld [vmem:[%s3 + $0xf0] sm:$0xff]
  %v162 = vld [vmem:[%s3 + $0xf8] sm:$0xff]
  %v163 = vld [vmem:[%s4] sm:$0xff]
  %v164 = vld [vmem:[%s4 + $0x8] sm:$0xff]
  %v165 = vld [vmem:[%s4 + $0x10] sm:$0xff]
  %v166 = vld [vmem:[%s4 + $0x18] sm:$0xff]
  %v167 = vld [vmem:[%s4 + $0x20] sm:$0xff]
  %v168 = vld [vmem:[%s4 + $0x28] sm:$0xff]
  %v169 = vld [vmem:[%s4 + $0x30] sm:$0xff]
  %v170 = vld [vmem:[%s4 + $0x38] sm:$0xff]
  %v171 = vld [vmem:[%s4 + $0x40] sm:$0xff]
  %v172 = vld [vmem:[%s4 + $0x48] sm:$0xff]
  %v173 = vld [vmem:[%s4 + $0x50] sm:$0xff]
  %v174 = vld [vmem:[%s4 + $0x58] sm:$0xff]
  %v175 = vld [vmem:[%s4 + $0x60] sm:$0xff]
  %v176 = vld [vmem:[%s4 + $0x68] sm:$0xff]
  %v177 = vld [vmem:[%s4 + $0x70] sm:$0xff]
  %v178 = vld [vmem:[%s4 + $0x78] sm:$0xff]
  %v179 = vld [vmem:[%s4 + $0x80] sm:$0xff]
  %v180 = vld [vmem:[%s4 + $0x88] sm:$0xff]
  %v181 = vld [vmem:[%s4 + $0x90] sm:$0xff]
  %v182 = vld [vmem:[%s4 + $0x98] sm:$0xff]
  %v183 = vld [vmem:[%s4 + $0xa0] sm:$0xff]
  %v184 = vld [vmem:[%s4 + $0xa8] sm:$0xff]
  %v185 = vld [vmem:[%s4 + $0xb0] sm:$0xff]
  %v186 = vld [vmem:[%s4 + $0xb8] sm:$0xff]
  %v187 = vld [vmem:[%s4 + $0xc0] sm:$0xff]
  %v188 = vld [vmem:[%s4 + $0xc8] sm:$0xff]
  %v189 = vld [vmem:[%s4 + $0xd0] sm:$0xff]
  %v190 = vld [vmem:[%s4 + $0xd8] sm:$0xff]
  %v191 = vld [vmem:[%s4 + $0xe0] sm:$0xff]
  %v192 = vld [vmem:[%s4 + $0xe8] sm:$0xff]
  %v193 = vld [vmem:[%s4 + $0xf0] sm:$0xff]
  %v194 = vld [vmem:[%s4 + $0xf8] sm:$0xff]
  %v227 = vunpack.c.l.b16 %v131
  %v228 = vunpack.c.h.b16 %v131
  %v229 = vunpack.c.l.b16 %v132
  %v230 = vunpack.c.h.b16 %v132
  %v231 = vunpack.c.l.b16 %v133
  %v232 = vunpack.c.h.b16 %v133
  %v233 = vunpack.c.l.b16 %v134
  %v234 = vunpack.c.h.b16 %v134
  %v235 = vunpack.c.l.b16 %v135
  %v236 = vunpack.c.h.b16 %v135
  %v237 = vunpack.c.l.b16 %v136
  %v238 = vunpack.c.h.b16 %v136
  %v239 = vunpack.c.l.b16 %v137
  %v240 = vunpack.c.h.b16 %v137
  %v241 = vunpack.c.l.b16 %v138
  %v242 = vunpack.c.h.b16 %v138
  %v243 = vunpack.c.l.b16 %v139
  %v244 = vunpack.c.h.b16 %v139
  %v245 = vunpack.c.l.b16 %v140
  %v246 = vunpack.c.h.b16 %v140
  %v247 = vunpack.c.l.b16 %v141
  %v248 = vunpack.c.h.b16 %v141
  %v249 = vunpack.c.l.b16 %v142
  %v250 = vunpack.c.h.b16 %v142
  %v251 = vunpack.c.l.b16 %v143
  %v252 = vunpack.c.h.b16 %v143
  %v253 = vunpack.c.l.b16 %v144
  %v254 = vunpack.c.h.b16 %v144
  %v255 = vunpack.c.l.b16 %v145
  %v256 = vunpack.c.h.b16 %v145
  %v257 = vunpack.c.l.b16 %v146
  %v258 = vunpack.c.h.b16 %v146
  %v259 = vunpack.c.l.b16 %v147
  %v260 = vunpack.c.h.b16 %v147
  %v261 = vunpack.c.l.b16 %v148
  %v262 = vunpack.c.h.b16 %v148
  %v263 = vunpack.c.l.b16 %v149
  %v264 = vunpack.c.h.b16 %v149
  %v265 = vunpack.c.l.b16 %v150
  %v266 = vunpack.c.h.b16 %v150
  %v267 = vunpack.c.l.b16 %v151
  %v268 = vunpack.c.h.b16 %v151
  %v269 = vunpack.c.l.b16 %v152
  %v270 = vunpack.c.h.b16 %v152
  %v271 = vunpack.c.l.b16 %v153
  %v272 = vunpack.c.h.b16 %v153
  %v273 = vunpack.c.l.b16 %v154
  %v274 = vunpack.c.h.b16 %v154
  %v275 = vunpack.c.l.b16 %v155
  %v276 = vunpack.c.h.b16 %v155
  %v277 = vunpack.c.l.b16 %v156
  %v278 = vunpack.c.h.b16 %v156
  %v279 = vunpack.c.l.b16 %v157
  %v280 = vunpack.c.h.b16 %v157
  %v281 = vunpack.c.l.b16 %v158
  %v282 = vunpack.c.h.b16 %v158
  %v283 = vunpack.c.l.b16 %v159
  %v284 = vunpack.c.h.b16 %v159
  %v285 = vunpack.c.l.b16 %v160
  %v286 = vunpack.c.h.b16 %v160
  %v287 = vunpack.c.l.b16 %v161
  %v288 = vunpack.c.h.b16 %v161
  %v289 = vunpack.c.l.b16 %v162
  %v290 = vunpack.c.h.b16 %v162
  %v291 = vpack.c.b16 %v229, %v227
  %v292 = vpack.c.b16 %v230, %v228
  %v293 = vpack.c.b16 %v233, %v231
  %v294 = vpack.c.b16 %v234, %v232
  %v295 = vpack.c.b16 %v237, %v235
  %v296 = vpack.c.b16 %v238, %v236
  %v297 = vpack.c.b16 %v241, %v239
  %v298 = vpack.c.b16 %v242, %v240
  %v299 = vpack.c.b16 %v245, %v243
  %v300 = vpack.c.b16 %v246, %v244
  %v301 = vpack.c.b16 %v249, %v247
  %v302 = vpack.c.b16 %v250, %v248
  %v303 = vpack.c.b16 %v253, %v251
  %v304 = vpack.c.b16 %v254, %v252
  %v305 = vpack.c.b16 %v257, %v255
  %v306 = vpack.c.b16 %v258, %v256
  %v307 = vpack.c.b16 %v261, %v259
  %v308 = vpack.c.b16 %v262, %v260
  %v309 = vpack.c.b16 %v265, %v263
  %v310 = vpack.c.b16 %v266, %v264
  %v311 = vpack.c.b16 %v269, %v267
  %v312 = vpack.c.b16 %v270, %v268
  %v313 = vpack.c.b16 %v273, %v271
  %v314 = vpack.c.b16 %v274, %v272
  %v315 = vpack.c.b16 %v277, %v275
  %v316 = vpack.c.b16 %v278, %v276
  %v317 = vpack.c.b16 %v281, %v279
  %v318 = vpack.c.b16 %v282, %v280
  %v319 = vpack.c.b16 %v285, %v283
  %v320 = vpack.c.b16 %v286, %v284
  %v321 = vpack.c.b16 %v289, %v287
  %v322 = vpack.c.b16 %v290, %v288
  %355 = vmatprep.subr.bf16.mxu0 %v292
  %356 = vmatpush1.bf16.msra.mxu0 %v291
  %357 = vmatprep.subr.bf16.mxu0 %v294
  %358 = vmatpush1.bf16.msra.mxu0 %v293
  %359 = vmatprep.subr.bf16.mxu0 %v296
  %360 = vmatpush1.bf16.msra.mxu0 %v295
  %361 = vmatprep.subr.bf16.mxu0 %v298
  %362 = vmatpush1.bf16.msra.mxu0 %v297
  %363 = vmatprep.subr.bf16.mxu0 %v300
  %364 = vmatpush1.bf16.msra.mxu0 %v299
  %365 = vmatprep.subr.bf16.mxu0 %v302
  %366 = vmatpush1.bf16.msra.mxu0 %v301
  %367 = vmatprep.subr.bf16.mxu0 %v304
  %368 = vmatpush1.bf16.msra.mxu0 %v303
  %369 = vmatprep.subr.bf16.mxu0 %v306
  %370 = vmatpush1.bf16.msra.mxu0 %v305
  %371 = vmatprep.subr.bf16.mxu0 %v308
  %372 = vmatpush1.bf16.msra.mxu0 %v307
  %373 = vmatprep.subr.bf16.mxu0 %v310
  %374 = vmatpush1.bf16.msra.mxu0 %v309
  %375 = vmatprep.subr.bf16.mxu0 %v312
  %376 = vmatpush1.bf16.msra.mxu0 %v311
  %377 = vmatprep.subr.bf16.mxu0 %v314
  %378 = vmatpush1.bf16.msra.mxu0 %v313
  %379 = vmatprep.subr.bf16.mxu0 %v316
  %380 = vmatpush1.bf16.msra.mxu0 %v315
  %381 = vmatprep.subr.bf16.mxu0 %v318
  %382 = vmatpush1.bf16.msra.mxu0 %v317
  %383 = vmatprep.subr.bf16.mxu0 %v320
  %384 = vmatpush1.bf16.msra.mxu0 %v319
  %385 = vmatprep.subr.bf16.mxu0 %v322
  %386 = vmatpush1.bf16.msra.mxu0 %v321
  %387 = vmatprep.mubr.bf16.mxu0 %v122
  %388 = vmatmul.mubr.bf16.gmra.mrb[0].mxu0 %v121
  %v389 = vpop.f32.mrb[0].mxu0
  %v390 = vadd.f32 0.0, %v389
  %v391 = vpop.f32.mrb[0].mxu0
  %v392 = vadd.f32 0.0, %v391
  %v393 = vpop.f32.mrb[0].mxu0
  %v394 = vadd.f32 0.0, %v393
  %v395 = vpop.f32.mrb[0].mxu0
  %v396 = vadd.f32 0.0, %v395
  %397 = vmatprep.mubr.bf16.mxu0 %v124
  %398 = vmatmul.mubr.bf16.gmra.mrb[0].mxu0 %v123
  %v399 = vpop.f32.mrb[0].mxu0
  %v400 = vadd.f32 0.0, %v399
  %v401 = vpop.f32.mrb[0].mxu0
  %v402 = vadd.f32 0.0, %v401
  %v403 = vpop.f32.mrb[0].mxu0
  %v404 = vadd.f32 0.0, %v403
  %v405 = vpop.f32.mrb[0].mxu0
  %v406 = vadd.f32 0.0, %v405
  %407 = vmatprep.mubr.bf16.mxu0 %v126
  %408 = vmatmul.mubr.bf16.gmra.mrb[0].mxu0 %v125
  %v409 = vpop.f32.mrb[0].mxu0
  %v410 = vadd.f32 0.0, %v409
  %v411 = vpop.f32.mrb[0].mxu0
  %v412 = vadd.f32 0.0, %v411
  %v413 = vpop.f32.mrb[0].mxu0
  %v414 = vadd.f32 0.0, %v413
  %v415 = vpop.f32.mrb[0].mxu0
  %v416 = vadd.f32 0.0, %v415
  %417 = vmatprep.mubr.bf16.mxu0 %v128
  %418 = vmatmul.mubr.bf16.gmra.mrb[0].mxu0 %v127
  %v419 = vpop.f32.mrb[0].mxu0
  %v420 = vadd.f32 0.0, %v419
  %v421 = vpop.f32.mrb[0].mxu0
  %v422 = vadd.f32 0.0, %v421
  %v423 = vpop.f32.mrb[0].mxu0
  %v424 = vadd.f32 0.0, %v423
  %v425 = vpop.f32.mrb[0].mxu0
  %v426 = vadd.f32 0.0, %v425
  %427 = vmatprep.mubr.bf16.mxu0 %v130
  %428 = vmatmul.mubr.bf16.gmra.mrb[0].mxu0 %v129
  %v429 = vpop.f32.mrb[0].mxu0
  %v430 = vadd.f32 0.0, %v429
  %v431 = vpop.f32.mrb[0].mxu0
  %v432 = vadd.f32 0.0, %v431
  %v433 = vpop.f32.mrb[0].mxu0
  %v434 = vadd.f32 0.0, %v433
  %v435 = vpop.f32.mrb[0].mxu0
  %v436 = vadd.f32 0.0, %v435
  %437 = vdwg.mxu0
  %438 = vmatprep.subr.bf16.mxu0 %v292
  %439 = vmatpush1.bf16.msra.mxu0 %v291
  %440 = vmatprep.subr.bf16.mxu0 %v294
  %441 = vmatpush1.bf16.msra.mxu0 %v293
  %442 = vmatprep.subr.bf16.mxu0 %v296
  %443 = vmatpush1.bf16.msra.mxu0 %v295
  %444 = vmatprep.subr.bf16.mxu0 %v298
  %445 = vmatpush1.bf16.msra.mxu0 %v297
  %446 = vmatprep.subr.bf16.mxu0 %v300
  %447 = vmatpush1.bf16.msra.mxu0 %v299
  %448 = vmatprep.subr.bf16.mxu0 %v302
  %449 = vmatpush1.bf16.msra.mxu0 %v301
  %450 = vmatprep.subr.bf16.mxu0 %v304
  %451 = vmatpush1.bf16.msra.mxu0 %v303
  %452 = vmatprep.subr.bf16.mxu0 %v306
  %453 = vmatpush1.bf16.msra.mxu0 %v305
  %454 = vmatprep.subr.bf16.mxu0 %v308
  %455 = vmatpush1.bf16.msra.mxu0 %v307
  %456 = vmatprep.subr.bf16.mxu0 %v310
  %457 = vmatpush1.bf16.msra.mxu0 %v309
  %458 = vmatprep.subr.bf16.mxu0 %v312
  %459 = vmatpush1.bf16.msra.mxu0 %v311
  %460 = vmatprep.subr.bf16.mxu0 %v314
  %461 = vmatpush1.bf16.msra.mxu0 %v313
  %462 = vmatprep.subr.bf16.mxu0 %v316
  %463 = vmatpush1.bf16.msra.mxu0 %v315
  %464 = vmatprep.subr.bf16.mxu0 %v318
  %465 = vmatpush1.bf16.msra.mxu0 %v317
  %466 = vmatprep.subr.bf16.mxu0 %v320
  %467 = vmatpush1.bf16.msra.mxu0 %v319
  %468 = vmatprep.subr.bf16.mxu0 %v322
  %469 = vmatpush1.bf16.msra.mxu0 %v321
  %470 = vmatprep.mubr.bf16.mxu0 %v72
  %471 = vmatmul.mubr.bf16.gmra.mrb[0].mxu0 %v71
  %v472 = vpop.f32.mrb[0].mxu0
  %v473 = vadd.f32 %v390, %v472
  %v474 = vpop.f32.mrb[0].mxu0
  %v475 = vadd.f32 %v392, %v474
  %v476 = vpop.f32.mrb[0].mxu0
  %v477 = vadd.f32 %v394, %v476
  %v478 = vpop.f32.mrb[0].mxu0
  %v479 = vadd.f32 %v396, %v478
  %480 = vmatprep.mubr.bf16.mxu0 %v74
  %481 = vmatmul.mubr.bf16.gmra.mrb[0].mxu0 %v73
  %v482 = vpop.f32.mrb[0].mxu0
  %v483 = vadd.f32 %v400, %v482
  %v484 = vpop.f32.mrb[0].mxu0
  %v485 = vadd.f32 %v402, %v484
  %v486 = vpop.f32.mrb[0].mxu0
  %v487 = vadd.f32 %v404, %v486
  %v488 = vpop.f32.mrb[0].mxu0
  %v489 = vadd.f32 %v406, %v488
  %490 = vmatprep.mubr.bf16.mxu0 %v76
  %491 = vmatmul.mubr.bf16.gmra.mrb[0].mxu0 %v75
  %v492 = vpop.f32.mrb[0].mxu0
  %v493 = vadd.f32 %v410, %v492
  %v494 = vpop.f32.mrb[0].mxu0
  %v495 = vadd.f32 %v412, %v494
  %v496 = vpop.f32.mrb[0].mxu0
  %v497 = vadd.f32 %v414, %v496
  %v498 = vpop.f32.mrb[0].mxu0
  %v499 = vadd.f32 %v416, %v498
  %500 = vmatprep.mubr.bf16.mxu0 %v78
  %501 = vmatmul.mubr.bf16.gmra.mrb[0].mxu0 %v77
  %v502 = vpop.f32.mrb[0].mxu0
  %v503 = vadd.f32 %v420, %v502
  %v504 = vpop.f32.mrb[0].mxu0
  %v505 = vadd.f32 %v422, %v504
  %v506 = vpop.f32.mrb[0].mxu0
  %v507 = vadd.f32 %v424, %v506
  %v508 = vpop.f32.mrb[0].mxu0
  %v509 = vadd.f32 %v426, %v508
  %510 = vmatprep.mubr.bf16.mxu0 %v80
  %511 = vmatmul.mubr.bf16.gmra.mrb[0].mxu0 %v79
  %v512 = vpop.f32.mrb[0].mxu0
  %v513 = vadd.f32 %v430, %v512
  %v514 = vpop.f32.mrb[0].mxu0
  %v515 = vadd.f32 %v432, %v514
  %v516 = vpop.f32.mrb[0].mxu0
  %v517 = vadd.f32 %v434, %v516
  %v518 = vpop.f32.mrb[0].mxu0
  %v519 = vadd.f32 %v436, %v518
  %520 = vdwg.mxu0
  %v553 = vunpack.c.l.b16 %v163
  %v554 = vunpack.c.h.b16 %v163
  %v555 = vunpack.c.l.b16 %v164
  %v556 = vunpack.c.h.b16 %v164
  %v557 = vunpack.c.l.b16 %v165
  %v558 = vunpack.c.h.b16 %v165
  %v559 = vunpack.c.l.b16 %v166
  %v560 = vunpack.c.h.b16 %v166
  %v561 = vunpack.c.l.b16 %v167
  %v562 = vunpack.c.h.b16 %v167
  %v563 = vunpack.c.l.b16 %v168
  %v564 = vunpack.c.h.b16 %v168
  %v565 = vunpack.c.l.b16 %v169
  %v566 = vunpack.c.h.b16 %v169
  %v567 = vunpack.c.l.b16 %v170
  %v568 = vunpack.c.h.b16 %v170
  %v569 = vunpack.c.l.b16 %v171
  %v570 = vunpack.c.h.b16 %v171
  %v571 = vunpack.c.l.b16 %v172
  %v572 = vunpack.c.h.b16 %v172
  %v573 = vunpack.c.l.b16 %v173
  %v574 = vunpack.c.h.b16 %v173
  %v575 = vunpack.c.l.b16 %v174
  %v576 = vunpack.c.h.b16 %v174
  %v577 = vunpack.c.l.b16 %v175
  %v578 = vunpack.c.h.b16 %v175
  %v579 = vunpack.c.l.b16 %v176
  %v580 = vunpack.c.h.b16 %v176
  %v581 = vunpack.c.l.b16 %v177
  %v582 = vunpack.c.h.b16 %v177
  %v583 = vunpack.c.l.b16 %v178
  %v584 = vunpack.c.h.b16 %v178
  %v585 = vunpack.c.l.b16 %v179
  %v586 = vunpack.c.h.b16 %v179
  %v587 = vunpack.c.l.b16 %v180
  %v588 = vunpack.c.h.b16 %v180
  %v589 = vunpack.c.l.b16 %v181
  %v590 = vunpack.c.h.b16 %v181
  %v591 = vunpack.c.l.b16 %v182
  %v592 = vunpack.c.h.b16 %v182
  %v593 = vunpack.c.l.b16 %v183
  %v594 = vunpack.c.h.b16 %v183
  %v595 = vunpack.c.l.b16 %v184
  %v596 = vunpack.c.h.b16 %v184
  %v597 = vunpack.c.l.b16 %v185
  %v598 = vunpack.c.h.b16 %v185
  %v599 = vunpack.c.l.b16 %v186
  %v600 = vunpack.c.h.b16 %v186
  %v601 = vunpack.c.l.b16 %v187
  %v602 = vunpack.c.h.b16 %v187
  %v603 = vunpack.c.l.b16 %v188
  %v604 = vunpack.c.h.b16 %v188
  %v605 = vunpack.c.l.b16 %v189
  %v606 = vunpack.c.h.b16 %v189
  %v607 = vunpack.c.l.b16 %v190
  %v608 = vunpack.c.h.b16 %v190
  %v609 = vunpack.c.l.b16 %v191
  %v610 = vunpack.c.h.b16 %v191
  %v611 = vunpack.c.l.b16 %v192
  %v612 = vunpack.c.h.b16 %v192
  %v613 = vunpack.c.l.b16 %v193
  %v614 = vunpack.c.h.b16 %v193
  %v615 = vunpack.c.l.b16 %v194
  %v616 = vunpack.c.h.b16 %v194
  %v617 = vpack.c.b16 %v555, %v553
  %v618 = vpack.c.b16 %v556, %v554
  %v619 = vpack.c.b16 %v559, %v557
  %v620 = vpack.c.b16 %v560, %v558
  %v621 = vpack.c.b16 %v563, %v561
  %v622 = vpack.c.b16 %v564, %v562
  %v623 = vpack.c.b16 %v567, %v565
  %v624 = vpack.c.b16 %v568, %v566
  %v625 = vpack.c.b16 %v571, %v569
  %v626 = vpack.c.b16 %v572, %v570
  %v627 = vpack.c.b16 %v575, %v573
  %v628 = vpack.c.b16 %v576, %v574
  %v629 = vpack.c.b16 %v579, %v577
  %v630 = vpack.c.b16 %v580, %v578
  %v631 = vpack.c.b16 %v583, %v581
  %v632 = vpack.c.b16 %v584, %v582
  %v633 = vpack.c.b16 %v587, %v585
  %v634 = vpack.c.b16 %v588, %v586
  %v635 = vpack.c.b16 %v591, %v589
  %v636 = vpack.c.b16 %v592, %v590
  %v637 = vpack.c.b16 %v595, %v593
  %v638 = vpack.c.b16 %v596, %v594
  %v639 = vpack.c.b16 %v599, %v597
  %v640 = vpack.c.b16 %v600, %v598
  %v641 = vpack.c.b16 %v603, %v601
  %v642 = vpack.c.b16 %v604, %v602
  %v643 = vpack.c.b16 %v607, %v605
  %v644 = vpack.c.b16 %v608, %v606
  %v645 = vpack.c.b16 %v611, %v609
  %v646 = vpack.c.b16 %v612, %v610
  %v647 = vpack.c.b16 %v615, %v613
  %v648 = vpack.c.b16 %v616, %v614
  %681 = vmatprep.subr.bf16.mxu0 %v618
  %682 = vmatpush1.bf16.msra.mxu0 %v617
  %683 = vmatprep.subr.bf16.mxu0 %v620
  %684 = vmatpush1.bf16.msra.mxu0 %v619
  %685 = vmatprep.subr.bf16.mxu0 %v622
  %686 = vmatpush1.bf16.msra.mxu0 %v621
  %687 = vmatprep.subr.bf16.mxu0 %v624
  %688 = vmatpush1.bf16.msra.mxu0 %v623
  %689 = vmatprep.subr.bf16.mxu0 %v626
  %690 = vmatpush1.bf16.msra.mxu0 %v625
  %691 = vmatprep.subr.bf16.mxu0 %v628
  %692 = vmatpush1.bf16.msra.mxu0 %v627
  %693 = vmatprep.subr.bf16.mxu0 %v630
  %694 = vmatpush1.bf16.msra.mxu0 %v629
  %695 = vmatprep.subr.bf16.mxu0 %v632
  %696 = vmatpush1.bf16.msra.mxu0 %v631
  %697 = vmatprep.subr.bf16.mxu0 %v634
  %698 = vmatpush1.bf16.msra.mxu0 %v633
  %699 = vmatprep.subr.bf16.mxu0 %v636
  %700 = vmatpush1.bf16.msra.mxu0 %v635
  %701 = vmatprep.subr.bf16.mxu0 %v638
  %702 = vmatpush1.bf16.msra.mxu0 %v637
  %703 = vmatprep.subr.bf16.mxu0 %v640
  %704 = vmatpush1.bf16.msra.mxu0 %v639
  %705 = vmatprep.subr.bf16.mxu0 %v642
  %706 = vmatpush1.bf16.msra.mxu0 %v641
  %707 = vmatprep.subr.bf16.mxu0 %v644
  %708 = vmatpush1.bf16.msra.mxu0 %v643
  %709 = vmatprep.subr.bf16.mxu0 %v646
  %710 = vmatpush1.bf16.msra.mxu0 %v645
  %711 = vmatprep.subr.bf16.mxu0 %v648
  %712 = vmatpush1.bf16.msra.mxu0 %v647
  %713 = vmatprep.mubr.bf16.mxu0 %v72
  %714 = vmatmul.mubr.bf16.gmra.mrb[0].mxu0 %v71
  %v715 = vpop.f32.mrb[0].mxu0
  %v716 = vadd.f32 0.0, %v715
  %v717 = vpop.f32.mrb[0].mxu0
  %v718 = vadd.f32 0.0, %v717
  %v719 = vpop.f32.mrb[0].mxu0
  %v720 = vadd.f32 0.0, %v719
  %v721 = vpop.f32.mrb[0].mxu0
  %v722 = vadd.f32 0.0, %v721
  %723 = vmatprep.mubr.bf16.mxu0 %v74
  %724 = vmatmul.mubr.bf16.gmra.mrb[0].mxu0 %v73
  %v725 = vpop.f32.mrb[0].mxu0
  %v726 = vadd.f32 0.0, %v725
  %v727 = vpop.f32.mrb[0].mxu0
  %v728 = vadd.f32 0.0, %v727
  %v729 = vpop.f32.mrb[0].mxu0
  %v730 = vadd.f32 0.0, %v729
  %v731 = vpop.f32.mrb[0].mxu0
  %v732 = vadd.f32 0.0, %v731
  %733 = vmatprep.mubr.bf16.mxu0 %v76
  %734 = vmatmul.mubr.bf16.gmra.mrb[0].mxu0 %v75
  %v735 = vpop.f32.mrb[0].mxu0
  %v736 = vadd.f32 0.0, %v735
  %v737 = vpop.f32.mrb[0].mxu0
  %v738 = vadd.f32 0.0, %v737
  %v739 = vpop.f32.mrb[0].mxu0
  %v740 = vadd.f32 0.0, %v739
  %v741 = vpop.f32.mrb[0].mxu0
  %v742 = vadd.f32 0.0, %v741
  %743 = vmatprep.mubr.bf16.mxu0 %v78
  %744 = vmatmul.mubr.bf16.gmra.mrb[0].mxu0 %v77
  %v745 = vpop.f32.mrb[0].mxu0
  %v746 = vadd.f32 0.0, %v745
  %v747 = vpop.f32.mrb[0].mxu0
  %v748 = vadd.f32 0.0, %v747
  %v749 = vpop.f32.mrb[0].mxu0
  %v750 = vadd.f32 0.0, %v749
  %v751 = vpop.f32.mrb[0].mxu0
  %v752 = vadd.f32 0.0, %v751
  %753 = vmatprep.mubr.bf16.mxu0 %v80
  %754 = vmatmul.mubr.bf16.gmra.mrb[0].mxu0 %v79
  %v755 = vpop.f32.mrb[0].mxu0
  %v756 = vadd.f32 0.0, %v755
  %v757 = vpop.f32.mrb[0].mxu0
  %v758 = vadd.f32 0.0, %v757
  %v759 = vpop.f32.mrb[0].mxu0
  %v760 = vadd.f32 0.0, %v759
  %v761 = vpop.f32.mrb[0].mxu0
  %v762 = vadd.f32 0.0, %v761
  %763 = vdwg.mxu0
  %v764 = vadd.f32 %v473, %v716
  %v765 = vadd.f32 %v475, %v718
  %v766 = vadd.f32 %v477, %v720
  %v767 = vadd.f32 %v479, %v722
  %v768 = vadd.f32 %v483, %v726
  %v769 = vadd.f32 %v485, %v728
  %v770 = vadd.f32 %v487, %v730
  %v771 = vadd.f32 %v489, %v732
  %v772 = vadd.f32 %v493, %v736
  %v773 = vadd.f32 %v495, %v738
  %v774 = vadd.f32 %v497, %v740
  %v775 = vadd.f32 %v499, %v742
  %v776 = vadd.f32 %v503, %v746
  %v777 = vadd.f32 %v505, %v748
  %v778 = vadd.f32 %v507, %v750
  %v779 = vadd.f32 %v509, %v752
  %v780 = vadd.f32 %v513, %v756
  %v781 = vadd.f32 %v515, %v758
  %v782 = vadd.f32 %v517, %v760
  %v783 = vadd.f32 %v519, %v762
  %v784 = vpack.c.bf16 %v766, %v764
  %v785 = vpack.c.bf16 %v767, %v765
  %v786 = vpack.c.bf16 %v770, %v768
  %v787 = vpack.c.bf16 %v771, %v769
  %v788 = vpack.c.bf16 %v774, %v772
  %v789 = vpack.c.bf16 %v775, %v773
  %v790 = vpack.c.bf16 %v778, %v776
  %v791 = vpack.c.bf16 %v779, %v777
  %v792 = vpack.c.bf16 %v782, %v780
  %v793 = vpack.c.bf16 %v783, %v781
  %v794 = vunpack.c.l.bf16 %v784
  %v795 = vunpack.c.l.bf16 %v785
  %v796 = vunpack.c.l.bf16 %v786
  %v797 = vunpack.c.l.bf16 %v787
  %v798 = vunpack.c.l.bf16 %v788
  %v799 = vunpack.c.l.bf16 %v789
  %v800 = vunpack.c.l.bf16 %v790
  %v801 = vunpack.c.l.bf16 %v791
  %v802 = vunpack.c.l.bf16 %v792
  %v803 = vunpack.c.l.bf16 %v793
  %v804 = vunpack.c.h.bf16 %v784
  %v805 = vunpack.c.h.bf16 %v785
  %v806 = vunpack.c.h.bf16 %v786
  %v807 = vunpack.c.h.bf16 %v787
  %v808 = vunpack.c.h.bf16 %v788
  %v809 = vunpack.c.h.bf16 %v789
  %v810 = vunpack.c.h.bf16 %v790
  %v811 = vunpack.c.h.bf16 %v791
  %v812 = vunpack.c.h.bf16 %v792
  %v813 = vunpack.c.h.bf16 %v793
  %v814 = vsub.f32 %v764, %v794
  %v815 = vsub.f32 %v765, %v795
  %v816 = vsub.f32 %v768, %v796
  %v817 = vsub.f32 %v769, %v797
  %v818 = vsub.f32 %v772, %v798
  %v819 = vsub.f32 %v773, %v799
  %v820 = vsub.f32 %v776, %v800
  %v821 = vsub.f32 %v777, %v801
  %v822 = vsub.f32 %v780, %v802
  %v823 = vsub.f32 %v781, %v803
  %v824 = vsub.f32 %v766, %v804
  %v825 = vsub.f32 %v767, %v805
  %v826 = vsub.f32 %v770, %v806
  %v827 = vsub.f32 %v771, %v807
  %v828 = vsub.f32 %v774, %v808
  %v829 = vsub.f32 %v775, %v809
  %v830 = vsub.f32 %v778, %v810
  %v831 = vsub.f32 %v779, %v811
  %v832 = vsub.f32 %v782, %v812
  %v833 = vsub.f32 %v783, %v813
  %v834 = vpack.c.bf16 %v824, %v814
  %v835 = vpack.c.bf16 %v825, %v815
  %v836 = vpack.c.bf16 %v826, %v816
  %v837 = vpack.c.bf16 %v827, %v817
  %v838 = vpack.c.bf16 %v828, %v818
  %v839 = vpack.c.bf16 %v829, %v819
  %v840 = vpack.c.bf16 %v830, %v820
  %v841 = vpack.c.bf16 %v831, %v821
  %v842 = vpack.c.bf16 %v832, %v822
  %v843 = vpack.c.bf16 %v833, %v823
  %v844 = vld [vmem:[%s1] sm:$0xf]
  %v845 = vld [vmem:[%s1 + $0x4] sm:$0xf]
  %v846 = vld [vmem:[%s2] sm:$0xf]
  %v847 = vld [vmem:[%s2 + $0x4] sm:$0xf]
  %v850 = vunpack.c.l.b16 %v846
  %v851 = vunpack.c.l.b16 %v847
  %v852 = vpack.c.b16 %v851, %v850
  %vm853 = vcmask 130048
  %v855 = vsel %vm853, %v852, 0
  %857 = vmatprep.subr.bf16.mxu0 %v785
  %858 = vmatpush1.bf16.msra.mxu0 %v784
  %859 = vmatprep.subr.bf16.mxu0 0
  %860 = vmatpush1.bf16.msra.mxu0 0
  %861 = vmatprep.subr.bf16.mxu0 0
  %862 = vmatpush1.bf16.msra.mxu0 0
  %863 = vmatprep.subr.bf16.mxu0 0
  %864 = vmatpush1.bf16.msra.mxu0 0
  %865 = vmatprep.subr.bf16.mxu0 0
  %866 = vmatpush1.bf16.msra.mxu0 0
  %867 = vmatprep.subr.bf16.mxu0 0
  %868 = vmatpush1.bf16.msra.mxu0 0
  %869 = vmatprep.subr.bf16.mxu0 0
  %870 = vmatpush1.bf16.msra.mxu0 0
  %871 = vmatprep.subr.bf16.mxu0 0
  %872 = vmatpush1.bf16.msra.mxu0 0
  %873 = vmatprep.subr.bf16.mxu0 0
  %874 = vmatpush1.bf16.msra.mxu0 0
  %875 = vmatprep.subr.bf16.mxu0 0
  %876 = vmatpush1.bf16.msra.mxu0 0
  %877 = vmatprep.subr.bf16.mxu0 0
  %878 = vmatpush1.bf16.msra.mxu0 0
  %879 = vmatprep.subr.bf16.mxu0 0
  %880 = vmatpush1.bf16.msra.mxu0 0
  %881 = vmatprep.subr.bf16.mxu0 0
  %882 = vmatpush1.bf16.msra.mxu0 0
  %883 = vmatprep.subr.bf16.mxu0 0
  %884 = vmatpush1.bf16.msra.mxu0 0
  %885 = vmatprep.subr.bf16.mxu0 0
  %886 = vmatpush1.bf16.msra.mxu0 0
  %887 = vmatprep.subr.bf16.mxu0 0
  %888 = vmatpush1.bf16.msra.mxu0 0
  %889 = vmatprep.mubr.bf16.mxu0 0
  %890 = vmatmul.mubr.bf16.gmra.mrb[0].mxu0 %v855
  %v891 = vpop.f32.mrb[0].mxu0
  %v892 = vadd.f32 0.0, %v891
  %v893 = vpop.f32.mrb[0].mxu0
  %v894 = vadd.f32 0.0, %v893
  %v895 = vpop.f32.mrb[0].mxu0
  %v896 = vadd.f32 0.0, %v895
  %v897 = vpop.f32.mrb[0].mxu0
  %v898 = vadd.f32 0.0, %v897
  %899 = vdwg.mxu0
  %900 = vmatprep.subr.bf16.mxu0 %v787
  %901 = vmatpush1.bf16.msra.mxu0 %v786
  %902 = vmatprep.subr.bf16.mxu0 0
  %903 = vmatpush1.bf16.msra.mxu0 0
  %904 = vmatprep.subr.bf16.mxu0 0
  %905 = vmatpush1.bf16.msra.mxu0 0
  %906 = vmatprep.subr.bf16.mxu0 0
  %907 = vmatpush1.bf16.msra.mxu0 0
  %908 = vmatprep.subr.bf16.mxu0 0
  %909 = vmatpush1.bf16.msra.mxu0 0
  %910 = vmatprep.subr.bf16.mxu0 0
  %911 = vmatpush1.bf16.msra.mxu0 0
  %912 = vmatprep.subr.bf16.mxu0 0
  %913 = vmatpush1.bf16.msra.mxu0 0
  %914 = vmatprep.subr.bf16.mxu0 0
  %915 = vmatpush1.bf16.msra.mxu0 0
  %916 = vmatprep.subr.bf16.mxu0 0
  %917 = vmatpush1.bf16.msra.mxu0 0
  %918 = vmatprep.subr.bf16.mxu0 0
  %919 = vmatpush1.bf16.msra.mxu0 0
  %920 = vmatprep.subr.bf16.mxu0 0
  %921 = vmatpush1.bf16.msra.mxu0 0
  %922 = vmatprep.subr.bf16.mxu0 0
  %923 = vmatpush1.bf16.msra.mxu0 0
  %924 = vmatprep.subr.bf16.mxu0 0
  %925 = vmatpush1.bf16.msra.mxu0 0
  %926 = vmatprep.subr.bf16.mxu0 0
  %927 = vmatpush1.bf16.msra.mxu0 0
  %928 = vmatprep.subr.bf16.mxu0 0
  %929 = vmatpush1.bf16.msra.mxu0 0
  %930 = vmatprep.subr.bf16.mxu0 0
  %931 = vmatpush1.bf16.msra.mxu0 0
  %932 = vmatprep.mubr.bf16.mxu0 0
  %933 = vmatmul.mubr.bf16.gmra.mrb[0].mxu0 %v855
  %v934 = vpop.f32.mrb[0].mxu0
  %v935 = vadd.f32 0.0, %v934
  %v936 = vpop.f32.mrb[0].mxu0
  %v937 = vadd.f32 0.0, %v936
  %v938 = vpop.f32.mrb[0].mxu0
  %v939 = vadd.f32 0.0, %v938
  %v940 = vpop.f32.mrb[0].mxu0
  %v941 = vadd.f32 0.0, %v940
  %942 = vdwg.mxu0
  %943 = vmatprep.subr.bf16.mxu0 %v789
  %944 = vmatpush1.bf16.msra.mxu0 %v788
  %945 = vmatprep.subr.bf16.mxu0 0
  %946 = vmatpush1.bf16.msra.mxu0 0
  %947 = vmatprep.subr.bf16.mxu0 0
  %948 = vmatpush1.bf16.msra.mxu0 0
  %949 = vmatprep.subr.bf16.mxu0 0
  %950 = vmatpush1.bf16.msra.mxu0 0
  %951 = vmatprep.subr.bf16.mxu0 0
  %952 = vmatpush1.bf16.msra.mxu0 0
  %953 = vmatprep.subr.bf16.mxu0 0
  %954 = vmatpush1.bf16.msra.mxu0 0
  %955 = vmatprep.subr.bf16.mxu0 0
  %956 = vmatpush1.bf16.msra.mxu0 0
  %957 = vmatprep.subr.bf16.mxu0 0
  %958 = vmatpush1.bf16.msra.mxu0 0
  %959 = vmatprep.subr.bf16.mxu0 0
  %960 = vmatpush1.bf16.msra.mxu0 0
  %961 = vmatprep.subr.bf16.mxu0 0
  %962 = vmatpush1.bf16.msra.mxu0 0
  %963 = vmatprep.subr.bf16.mxu0 0
  %964 = vmatpush1.bf16.msra.mxu0 0
  %965 = vmatprep.subr.bf16.mxu0 0
  %966 = vmatpush1.bf16.msra.mxu0 0
  %967 = vmatprep.subr.bf16.mxu0 0
  %968 = vmatpush1.bf16.msra.mxu0 0
  %969 = vmatprep.subr.bf16.mxu0 0
  %970 = vmatpush1.bf16.msra.mxu0 0
  %971 = vmatprep.subr.bf16.mxu0 0
  %972 = vmatpush1.bf16.msra.mxu0 0
  %973 = vmatprep.subr.bf16.mxu0 0
  %974 = vmatpush1.bf16.msra.mxu0 0
  %975 = vmatprep.mubr.bf16.mxu0 0
  %976 = vmatmul.mubr.bf16.gmra.mrb[0].mxu0 %v855
  %v977 = vpop.f32.mrb[0].mxu0
  %v978 = vadd.f32 0.0, %v977
  %v979 = vpop.f32.mrb[0].mxu0
  %v980 = vadd.f32 0.0, %v979
  %v981 = vpop.f32.mrb[0].mxu0
  %v982 = vadd.f32 0.0, %v981
  %v983 = vpop.f32.mrb[0].mxu0
  %v984 = vadd.f32 0.0, %v983
  %985 = vdwg.mxu0
  %986 = vmatprep.subr.bf16.mxu0 %v791
  %987 = vmatpush1.bf16.msra.mxu0 %v790
  %988 = vmatprep.subr.bf16.mxu0 0
  %989 = vmatpush1.bf16.msra.mxu0 0
  %990 = vmatprep.subr.bf16.mxu0 0
  %991 = vmatpush1.bf16.msra.mxu0 0
  %992 = vmatprep.subr.bf16.mxu0 0
  %993 = vmatpush1.bf16.msra.mxu0 0
  %994 = vmatprep.subr.bf16.mxu0 0
  %995 = vmatpush1.bf16.msra.mxu0 0
  %996 = vmatprep.subr.bf16.mxu0 0
  %997 = vmatpush1.bf16.msra.mxu0 0
  %998 = vmatprep.subr.bf16.mxu0 0
  %999 = vmatpush1.bf16.msra.mxu0 0
  %1000 = vmatprep.subr.bf16.mxu0 0
  %1001 = vmatpush1.bf16.msra.mxu0 0
  %1002 = vmatprep.subr.bf16.mxu0 0
  %1003 = vmatpush1.bf16.msra.mxu0 0
  %1004 = vmatprep.subr.bf16.mxu0 0
  %1005 = vmatpush1.bf16.msra.mxu0 0
  %1006 = vmatprep.subr.bf16.mxu0 0
  %1007 = vmatpush1.bf16.msra.mxu0 0
  %1008 = vmatprep.subr.bf16.mxu0 0
  %1009 = vmatpush1.bf16.msra.mxu0 0
  %1010 = vmatprep.subr.bf16.mxu0 0
  %1011 = vmatpush1.bf16.msra.mxu0 0
  %1012 = vmatprep.subr.bf16.mxu0 0
  %1013 = vmatpush1.bf16.msra.mxu0 0
  %1014 = vmatprep.subr.bf16.mxu0 0
  %1015 = vmatpush1.bf16.msra.mxu0 0
  %1016 = vmatprep.subr.bf16.mxu0 0
  %1017 = vmatpush1.bf16.msra.mxu0 0
  %1018 = vmatprep.mubr.bf16.mxu0 0
  %1019 = vmatmul.mubr.bf16.gmra.mrb[0].mxu0 %v855
  %v1020 = vpop.f32.mrb[0].mxu0
  %v1021 = vadd.f32 0.0, %v1020
  %v1022 = vpop.f32.mrb[0].mxu0
  %v1023 = vadd.f32 0.0, %v1022
  %v1024 = vpop.f32.mrb[0].mxu0
  %v1025 = vadd.f32 0.0, %v1024
  %v1026 = vpop.f32.mrb[0].mxu0
  %v1027 = vadd.f32 0.0, %v1026
  %1028 = vdwg.mxu0
  %1029 = vmatprep.subr.bf16.mxu0 %v793
  %1030 = vmatpush1.bf16.msra.mxu0 %v792
  %1031 = vmatprep.subr.bf16.mxu0 0
  %1032 = vmatpush1.bf16.msra.mxu0 0
  %1033 = vmatprep.subr.bf16.mxu0 0
  %1034 = vmatpush1.bf16.msra.mxu0 0
  %1035 = vmatprep.subr.bf16.mxu0 0
  %1036 = vmatpush1.bf16.msra.mxu0 0
  %1037 = vmatprep.subr.bf16.mxu0 0
  %1038 = vmatpush1.bf16.msra.mxu0 0
  %1039 = vmatprep.subr.bf16.mxu0 0
  %1040 = vmatpush1.bf16.msra.mxu0 0
  %1041 = vmatprep.subr.bf16.mxu0 0
  %1042 = vmatpush1.bf16.msra.mxu0 0
  %1043 = vmatprep.subr.bf16.mxu0 0
  %1044 = vmatpush1.bf16.msra.mxu0 0
  %1045 = vmatprep.subr.bf16.mxu0 0
  %1046 = vmatpush1.bf16.msra.mxu0 0
  %1047 = vmatprep.subr.bf16.mxu0 0
  %1048 = vmatpush1.bf16.msra.mxu0 0
  %1049 = vmatprep.subr.bf16.mxu0 0
  %1050 = vmatpush1.bf16.msra.mxu0 0
  %1051 = vmatprep.subr.bf16.mxu0 0
  %1052 = vmatpush1.bf16.msra.mxu0 0
  %1053 = vmatprep.subr.bf16.mxu0 0
  %1054 = vmatpush1.bf16.msra.mxu0 0
  %1055 = vmatprep.subr.bf16.mxu0 0
  %1056 = vmatpush1.bf16.msra.mxu0 0
  %1057 = vmatprep.subr.bf16.mxu0 0
  %1058 = vmatpush1.bf16.msra.mxu0 0
  %1059 = vmatprep.subr.bf16.mxu0 0
  %1060 = vmatpush1.bf16.msra.mxu0 0
  %1061 = vmatprep.mubr.bf16.mxu0 0
  %1062 = vmatmul.mubr.bf16.gmra.mrb[0].mxu0 %v855
  %v1063 = vpop.f32.mrb[0].mxu0
  %v1064 = vadd.f32 0.0, %v1063
  %v1065 = vpop.f32.mrb[0].mxu0
  %v1066 = vadd.f32 0.0, %v1065
  %v1067 = vpop.f32.mrb[0].mxu0
  %v1068 = vadd.f32 0.0, %v1067
  %v1069 = vpop.f32.mrb[0].mxu0
  %v1070 = vadd.f32 0.0, %v1069
  %1071 = vdwg.mxu0
  %v1074 = vunpack.c.l.b16 %v844
  %v1075 = vunpack.c.l.b16 %v845
  %v1076 = vpack.c.b16 %v1075, %v1074
  %v1078 = vsel %vm853, %v1076, 0
  %1080 = vmatprep.subr.bf16.mxu0 %v785
  %1081 = vmatpush1.bf16.msra.mxu0 %v784
  %1082 = vmatprep.subr.bf16.mxu0 0
  %1083 = vmatpush1.bf16.msra.mxu0 0
  %1084 = vmatprep.subr.bf16.mxu0 0
  %1085 = vmatpush1.bf16.msra.mxu0 0
  %1086 = vmatprep.subr.bf16.mxu0 0
  %1087 = vmatpush1.bf16.msra.mxu0 0
  %1088 = vmatprep.subr.bf16.mxu0 0
  %1089 = vmatpush1.bf16.msra.mxu0 0
  %1090 = vmatprep.subr.bf16.mxu0 0
  %1091 = vmatpush1.bf16.msra.mxu0 0
  %1092 = vmatprep.subr.bf16.mxu0 0
  %1093 = vmatpush1.bf16.msra.mxu0 0
  %1094 = vmatprep.subr.bf16.mxu0 0
  %1095 = vmatpush1.bf16.msra.mxu0 0
  %1096 = vmatprep.subr.bf16.mxu0 0
  %1097 = vmatpush1.bf16.msra.mxu0 0
  %1098 = vmatprep.subr.bf16.mxu0 0
  %1099 = vmatpush1.bf16.msra.mxu0 0
  %1100 = vmatprep.subr.bf16.mxu0 0
  %1101 = vmatpush1.bf16.msra.mxu0 0
  %1102 = vmatprep.subr.bf16.mxu0 0
  %1103 = vmatpush1.bf16.msra.mxu0 0
  %1104 = vmatprep.subr.bf16.mxu0 0
  %1105 = vmatpush1.bf16.msra.mxu0 0
  %1106 = vmatprep.subr.bf16.mxu0 0
  %1107 = vmatpush1.bf16.msra.mxu0 0
  %1108 = vmatprep.subr.bf16.mxu0 0
  %1109 = vmatpush1.bf16.msra.mxu0 0
  %1110 = vmatprep.subr.bf16.mxu0 0
  %1111 = vmatpush1.bf16.msra.mxu0 0
  %1112 = vmatprep.mubr.bf16.mxu0 0
  %1113 = vmatmul.mubr.bf16.gmra.mrb[0].mxu0 %v1078
  %v1114 = vpop.f32.mrb[0].mxu0
  %v1115 = vadd.f32 %v892, %v1114
  %v1116 = vpop.f32.mrb[0].mxu0
  %v1117 = vadd.f32 %v894, %v1116
  %v1118 = vpop.f32.mrb[0].mxu0
  %v1119 = vadd.f32 %v896, %v1118
  %v1120 = vpop.f32.mrb[0].mxu0
  %v1121 = vadd.f32 %v898, %v1120
  %1122 = vdwg.mxu0
  %1123 = vmatprep.subr.bf16.mxu0 %v787
  %1124 = vmatpush1.bf16.msra.mxu0 %v786
  %1125 = vmatprep.subr.bf16.mxu0 0
  %1126 = vmatpush1.bf16.msra.mxu0 0
  %1127 = vmatprep.subr.bf16.mxu0 0
  %1128 = vmatpush1.bf16.msra.mxu0 0
  %1129 = vmatprep.subr.bf16.mxu0 0
  %1130 = vmatpush1.bf16.msra.mxu0 0
  %1131 = vmatprep.subr.bf16.mxu0 0
  %1132 = vmatpush1.bf16.msra.mxu0 0
  %1133 = vmatprep.subr.bf16.mxu0 0
  %1134 = vmatpush1.bf16.msra.mxu0 0
  %1135 = vmatprep.subr.bf16.mxu0 0
  %1136 = vmatpush1.bf16.msra.mxu0 0
  %1137 = vmatprep.subr.bf16.mxu0 0
  %1138 = vmatpush1.bf16.msra.mxu0 0
  %1139 = vmatprep.subr.bf16.mxu0 0
  %1140 = vmatpush1.bf16.msra.mxu0 0
  %1141 = vmatprep.subr.bf16.mxu0 0
  %1142 = vmatpush1.bf16.msra.mxu0 0
  %1143 = vmatprep.subr.bf16.mxu0 0
  %1144 = vmatpush1.bf16.msra.mxu0 0
  %1145 = vmatprep.subr.bf16.mxu0 0
  %1146 = vmatpush1.bf16.msra.mxu0 0
  %1147 = vmatprep.subr.bf16.mxu0 0
  %1148 = vmatpush1.bf16.msra.mxu0 0
  %1149 = vmatprep.subr.bf16.mxu0 0
  %1150 = vmatpush1.bf16.msra.mxu0 0
  %1151 = vmatprep.subr.bf16.mxu0 0
  %1152 = vmatpush1.bf16.msra.mxu0 0
  %1153 = vmatprep.subr.bf16.mxu0 0
  %1154 = vmatpush1.bf16.msra.mxu0 0
  %1155 = vmatprep.mubr.bf16.mxu0 0
  %1156 = vmatmul.mubr.bf16.gmra.mrb[0].mxu0 %v1078
  %v1157 = vpop.f32.mrb[0].mxu0
  %v1158 = vadd.f32 %v935, %v1157
  %v1159 = vpop.f32.mrb[0].mxu0
  %v1160 = vadd.f32 %v937, %v1159
  %v1161 = vpop.f32.mrb[0].mxu0
  %v1162 = vadd.f32 %v939, %v1161
  %v1163 = vpop.f32.mrb[0].mxu0
  %v1164 = vadd.f32 %v941, %v1163
  %1165 = vdwg.mxu0
  %1166 = vmatprep.subr.bf16.mxu0 %v789
  %1167 = vmatpush1.bf16.msra.mxu0 %v788
  %1168 = vmatprep.subr.bf16.mxu0 0
  %1169 = vmatpush1.bf16.msra.mxu0 0
  %1170 = vmatprep.subr.bf16.mxu0 0
  %1171 = vmatpush1.bf16.msra.mxu0 0
  %1172 = vmatprep.subr.bf16.mxu0 0
  %1173 = vmatpush1.bf16.msra.mxu0 0
  %1174 = vmatprep.subr.bf16.mxu0 0
  %1175 = vmatpush1.bf16.msra.mxu0 0
  %1176 = vmatprep.subr.bf16.mxu0 0
  %1177 = vmatpush1.bf16.msra.mxu0 0
  %1178 = vmatprep.subr.bf16.mxu0 0
  %1179 = vmatpush1.bf16.msra.mxu0 0
  %1180 = vmatprep.subr.bf16.mxu0 0
  %1181 = vmatpush1.bf16.msra.mxu0 0
  %1182 = vmatprep.subr.bf16.mxu0 0
  %1183 = vmatpush1.bf16.msra.mxu0 0
  %1184 = vmatprep.subr.bf16.mxu0 0
  %1185 = vmatpush1.bf16.msra.mxu0 0
  %1186 = vmatprep.subr.bf16.mxu0 0
  %1187 = vmatpush1.bf16.msra.mxu0 0
  %1188 = vmatprep.subr.bf16.mxu0 0
  %1189 = vmatpush1.bf16.msra.mxu0 0
  %1190 = vmatprep.subr.bf16.mxu0 0
  %1191 = vmatpush1.bf16.msra.mxu0 0
  %1192 = vmatprep.subr.bf16.mxu0 0
  %1193 = vmatpush1.bf16.msra.mxu0 0
  %1194 = vmatprep.subr.bf16.mxu0 0
  %1195 = vmatpush1.bf16.msra.mxu0 0
  %1196 = vmatprep.subr.bf16.mxu0 0
  %1197 = vmatpush1.bf16.msra.mxu0 0
  %1198 = vmatprep.mubr.bf16.mxu0 0
  %1199 = vmatmul.mubr.bf16.gmra.mrb[0].mxu0 %v1078
  %v1200 = vpop.f32.mrb[0].mxu0
  %v1201 = vadd.f32 %v978, %v1200
  %v1202 = vpop.f32.mrb[0].mxu0
  %v1203 = vadd.f32 %v980, %v1202
  %v1204 = vpop.f32.mrb[0].mxu0
  %v1205 = vadd.f32 %v982, %v1204
  %v1206 = vpop.f32.mrb[0].mxu0
  %v1207 = vadd.f32 %v984, %v1206
  %1208 = vdwg.mxu0
  %1209 = vmatprep.subr.bf16.mxu0 %v791
  %1210 = vmatpush1.bf16.msra.mxu0 %v790
  %1211 = vmatprep.subr.bf16.mxu0 0
  %1212 = vmatpush1.bf16.msra.mxu0 0
  %1213 = vmatprep.subr.bf16.mxu0 0
  %1214 = vmatpush1.bf16.msra.mxu0 0
  %1215 = vmatprep.subr.bf16.mxu0 0
  %1216 = vmatpush1.bf16.msra.mxu0 0
  %1217 = vmatprep.subr.bf16.mxu0 0
  %1218 = vmatpush1.bf16.msra.mxu0 0
  %1219 = vmatprep.subr.bf16.mxu0 0
  %1220 = vmatpush1.bf16.msra.mxu0 0
  %1221 = vmatprep.subr.bf16.mxu0 0
  %1222 = vmatpush1.bf16.msra.mxu0 0
  %1223 = vmatprep.subr.bf16.mxu0 0
  %1224 = vmatpush1.bf16.msra.mxu0 0
  %1225 = vmatprep.subr.bf16.mxu0 0
  %1226 = vmatpush1.bf16.msra.mxu0 0
  %1227 = vmatprep.subr.bf16.mxu0 0
  %1228 = vmatpush1.bf16.msra.mxu0 0
  %1229 = vmatprep.subr.bf16.mxu0 0
  %1230 = vmatpush1.bf16.msra.mxu0 0
  %1231 = vmatprep.subr.bf16.mxu0 0
  %1232 = vmatpush1.bf16.msra.mxu0 0
  %1233 = vmatprep.subr.bf16.mxu0 0
  %1234 = vmatpush1.bf16.msra.mxu0 0
  %1235 = vmatprep.subr.bf16.mxu0 0
  %1236 = vmatpush1.bf16.msra.mxu0 0
  %1237 = vmatprep.subr.bf16.mxu0 0
  %1238 = vmatpush1.bf16.msra.mxu0 0
  %1239 = vmatprep.subr.bf16.mxu0 0
  %1240 = vmatpush1.bf16.msra.mxu0 0
  %1241 = vmatprep.mubr.bf16.mxu0 0
  %1242 = vmatmul.mubr.bf16.gmra.mrb[0].mxu0 %v1078
  %v1243 = vpop.f32.mrb[0].mxu0
  %v1244 = vadd.f32 %v1021, %v1243
  %v1245 = vpop.f32.mrb[0].mxu0
  %v1246 = vadd.f32 %v1023, %v1245
  %v1247 = vpop.f32.mrb[0].mxu0
  %v1248 = vadd.f32 %v1025, %v1247
  %v1249 = vpop.f32.mrb[0].mxu0
  %v1250 = vadd.f32 %v1027, %v1249
  %1251 = vdwg.mxu0
  %1252 = vmatprep.subr.bf16.mxu0 %v793
  %1253 = vmatpush1.bf16.msra.mxu0 %v792
  %1254 = vmatprep.subr.bf16.mxu0 0
  %1255 = vmatpush1.bf16.msra.mxu0 0
  %1256 = vmatprep.subr.bf16.mxu0 0
  %1257 = vmatpush1.bf16.msra.mxu0 0
  %1258 = vmatprep.subr.bf16.mxu0 0
  %1259 = vmatpush1.bf16.msra.mxu0 0
  %1260 = vmatprep.subr.bf16.mxu0 0
  %1261 = vmatpush1.bf16.msra.mxu0 0
  %1262 = vmatprep.subr.bf16.mxu0 0
  %1263 = vmatpush1.bf16.msra.mxu0 0
  %1264 = vmatprep.subr.bf16.mxu0 0
  %1265 = vmatpush1.bf16.msra.mxu0 0
  %1266 = vmatprep.subr.bf16.mxu0 0
  %1267 = vmatpush1.bf16.msra.mxu0 0
  %1268 = vmatprep.subr.bf16.mxu0 0
  %1269 = vmatpush1.bf16.msra.mxu0 0
  %1270 = vmatprep.subr.bf16.mxu0 0
  %1271 = vmatpush1.bf16.msra.mxu0 0
  %1272 = vmatprep.subr.bf16.mxu0 0
  %1273 = vmatpush1.bf16.msra.mxu0 0
  %1274 = vmatprep.subr.bf16.mxu0 0
  %1275 = vmatpush1.bf16.msra.mxu0 0
  %1276 = vmatprep.subr.bf16.mxu0 0
  %1277 = vmatpush1.bf16.msra.mxu0 0
  %1278 = vmatprep.subr.bf16.mxu0 0
  %1279 = vmatpush1.bf16.msra.mxu0 0
  %1280 = vmatprep.subr.bf16.mxu0 0
  %1281 = vmatpush1.bf16.msra.mxu0 0
  %1282 = vmatprep.subr.bf16.mxu0 0
  %1283 = vmatpush1.bf16.msra.mxu0 0
  %1284 = vmatprep.mubr.bf16.mxu0 0
  %1285 = vmatmul.mubr.bf16.gmra.mrb[0].mxu0 %v1078
  %v1286 = vpop.f32.mrb[0].mxu0
  %v1287 = vadd.f32 %v1064, %v1286
  %v1288 = vpop.f32.mrb[0].mxu0
  %v1289 = vadd.f32 %v1066, %v1288
  %v1290 = vpop.f32.mrb[0].mxu0
  %v1291 = vadd.f32 %v1068, %v1290
  %v1292 = vpop.f32.mrb[0].mxu0
  %v1293 = vadd.f32 %v1070, %v1292
  %1294 = vdwg.mxu0
  %1295 = vmatprep.subr.bf16.mxu0 %v835
  %1296 = vmatpush1.bf16.msra.mxu0 %v834
  %1297 = vmatprep.subr.bf16.mxu0 0
  %1298 = vmatpush1.bf16.msra.mxu0 0
  %1299 = vmatprep.subr.bf16.mxu0 0
  %1300 = vmatpush1.bf16.msra.mxu0 0
  %1301 = vmatprep.subr.bf16.mxu0 0
  %1302 = vmatpush1.bf16.msra.mxu0 0
  %1303 = vmatprep.subr.bf16.mxu0 0
  %1304 = vmatpush1.bf16.msra.mxu0 0
  %1305 = vmatprep.subr.bf16.mxu0 0
  %1306 = vmatpush1.bf16.msra.mxu0 0
  %1307 = vmatprep.subr.bf16.mxu0 0
  %1308 = vmatpush1.bf16.msra.mxu0 0
  %1309 = vmatprep.subr.bf16.mxu0 0
  %1310 = vmatpush1.bf16.msra.mxu0 0
  %1311 = vmatprep.subr.bf16.mxu0 0
  %1312 = vmatpush1.bf16.msra.mxu0 0
  %1313 = vmatprep.subr.bf16.mxu0 0
  %1314 = vmatpush1.bf16.msra.mxu0 0
  %1315 = vmatprep.subr.bf16.mxu0 0
  %1316 = vmatpush1.bf16.msra.mxu0 0
  %1317 = vmatprep.subr.bf16.mxu0 0
  %1318 = vmatpush1.bf16.msra.mxu0 0
  %1319 = vmatprep.subr.bf16.mxu0 0
  %1320 = vmatpush1.bf16.msra.mxu0 0
  %1321 = vmatprep.subr.bf16.mxu0 0
  %1322 = vmatpush1.bf16.msra.mxu0 0
  %1323 = vmatprep.subr.bf16.mxu0 0
  %1324 = vmatpush1.bf16.msra.mxu0 0
  %1325 = vmatprep.subr.bf16.mxu0 0
  %1326 = vmatpush1.bf16.msra.mxu0 0
  %1327 = vmatprep.mubr.bf16.mxu0 0
  %1328 = vmatmul.mubr.bf16.gmra.mrb[0].mxu0 %v1078
  %v1329 = vpop.f32.mrb[0].mxu0
  %v1330 = vadd.f32 0.0, %v1329
  %v1331 = vpop.f32.mrb[0].mxu0
  %v1332 = vadd.f32 0.0, %v1331
  %v1333 = vpop.f32.mrb[0].mxu0
  %v1334 = vadd.f32 0.0, %v1333
  %v1335 = vpop.f32.mrb[0].mxu0
  %v1336 = vadd.f32 0.0, %v1335
  %1337 = vdwg.mxu0
  %1338 = vmatprep.subr.bf16.mxu0 %v837
  %1339 = vmatpush1.bf16.msra.mxu0 %v836
  %1340 = vmatprep.subr.bf16.mxu0 0
  %1341 = vmatpush1.bf16.msra.mxu0 0
  %1342 = vmatprep.subr.bf16.mxu0 0
  %1343 = vmatpush1.bf16.msra.mxu0 0
  %1344 = vmatprep.subr.bf16.mxu0 0
  %1345 = vmatpush1.bf16.msra.mxu0 0
  %1346 = vmatprep.subr.bf16.mxu0 0
  %1347 = vmatpush1.bf16.msra.mxu0 0
  %1348 = vmatprep.subr.bf16.mxu0 0
  %1349 = vmatpush1.bf16.msra.mxu0 0
  %1350 = vmatprep.subr.bf16.mxu0 0
  %1351 = vmatpush1.bf16.msra.mxu0 0
  %1352 = vmatprep.subr.bf16.mxu0 0
  %1353 = vmatpush1.bf16.msra.mxu0 0
  %1354 = vmatprep.subr.bf16.mxu0 0
  %1355 = vmatpush1.bf16.msra.mxu0 0
  %1356 = vmatprep.subr.bf16.mxu0 0
  %1357 = vmatpush1.bf16.msra.mxu0 0
  %1358 = vmatprep.subr.bf16.mxu0 0
  %1359 = vmatpush1.bf16.msra.mxu0 0
  %1360 = vmatprep.subr.bf16.mxu0 0
  %1361 = vmatpush1.bf16.msra.mxu0 0
  %1362 = vmatprep.subr.bf16.mxu0 0
  %1363 = vmatpush1.bf16.msra.mxu0 0
  %1364 = vmatprep.subr.bf16.mxu0 0
  %1365 = vmatpush1.bf16.msra.mxu0 0
  %1366 = vmatprep.subr.bf16.mxu0 0
  %1367 = vmatpush1.bf16.msra.mxu0 0
  %1368 = vmatprep.subr.bf16.mxu0 0
  %1369 = vmatpush1.bf16.msra.mxu0 0
  %1370 = vmatprep.mubr.bf16.mxu0 0
  %1371 = vmatmul.mubr.bf16.gmra.mrb[0].mxu0 %v1078
  %v1372 = vpop.f32.mrb[0].mxu0
  %v1373 = vadd.f32 0.0, %v1372
  %v1374 = vpop.f32.mrb[0].mxu0
  %v1375 = vadd.f32 0.0, %v1374
  %v1376 = vpop.f32.mrb[0].mxu0
  %v1377 = vadd.f32 0.0, %v1376
  %v1378 = vpop.f32.mrb[0].mxu0
  %v1379 = vadd.f32 0.0, %v1378
  %1380 = vdwg.mxu0
  %1381 = vmatprep.subr.bf16.mxu0 %v839
  %1382 = vmatpush1.bf16.msra.mxu0 %v838
  %1383 = vmatprep.subr.bf16.mxu0 0
  %1384 = vmatpush1.bf16.msra.mxu0 0
  %1385 = vmatprep.subr.bf16.mxu0 0
  %1386 = vmatpush1.bf16.msra.mxu0 0
  %1387 = vmatprep.subr.bf16.mxu0 0
  %1388 = vmatpush1.bf16.msra.mxu0 0
  %1389 = vmatprep.subr.bf16.mxu0 0
  %1390 = vmatpush1.bf16.msra.mxu0 0
  %1391 = vmatprep.subr.bf16.mxu0 0
  %1392 = vmatpush1.bf16.msra.mxu0 0
  %1393 = vmatprep.subr.bf16.mxu0 0
  %1394 = vmatpush1.bf16.msra.mxu0 0
  %1395 = vmatprep.subr.bf16.mxu0 0
  %1396 = vmatpush1.bf16.msra.mxu0 0
  %1397 = vmatprep.subr.bf16.mxu0 0
  %1398 = vmatpush1.bf16.msra.mxu0 0
  %1399 = vmatprep.subr.bf16.mxu0 0
  %1400 = vmatpush1.bf16.msra.mxu0 0
  %1401 = vmatprep.subr.bf16.mxu0 0
  %1402 = vmatpush1.bf16.msra.mxu0 0
  %1403 = vmatprep.subr.bf16.mxu0 0
  %1404 = vmatpush1.bf16.msra.mxu0 0
  %1405 = vmatprep.subr.bf16.mxu0 0
  %1406 = vmatpush1.bf16.msra.mxu0 0
  %1407 = vmatprep.subr.bf16.mxu0 0
  %1408 = vmatpush1.bf16.msra.mxu0 0
  %1409 = vmatprep.subr.bf16.mxu0 0
  %1410 = vmatpush1.bf16.msra.mxu0 0
  %1411 = vmatprep.subr.bf16.mxu0 0
  %1412 = vmatpush1.bf16.msra.mxu0 0
  %1413 = vmatprep.mubr.bf16.mxu0 0
  %1414 = vmatmul.mubr.bf16.gmra.mrb[0].mxu0 %v1078
  %v1415 = vpop.f32.mrb[0].mxu0
  %v1416 = vadd.f32 0.0, %v1415
  %v1417 = vpop.f32.mrb[0].mxu0
  %v1418 = vadd.f32 0.0, %v1417
  %v1419 = vpop.f32.mrb[0].mxu0
  %v1420 = vadd.f32 0.0, %v1419
  %v1421 = vpop.f32.mrb[0].mxu0
  %v1422 = vadd.f32 0.0, %v1421
  %1423 = vdwg.mxu0
  %1424 = vmatprep.subr.bf16.mxu0 %v841
  %1425 = vmatpush1.bf16.msra.mxu0 %v840
  %1426 = vmatprep.subr.bf16.mxu0 0
  %1427 = vmatpush1.bf16.msra.mxu0 0
  %1428 = vmatprep.subr.bf16.mxu0 0
  %1429 = vmatpush1.bf16.msra.mxu0 0
  %1430 = vmatprep.subr.bf16.mxu0 0
  %1431 = vmatpush1.bf16.msra.mxu0 0
  %1432 = vmatprep.subr.bf16.mxu0 0
  %1433 = vmatpush1.bf16.msra.mxu0 0
  %1434 = vmatprep.subr.bf16.mxu0 0
  %1435 = vmatpush1.bf16.msra.mxu0 0
  %1436 = vmatprep.subr.bf16.mxu0 0
  %1437 = vmatpush1.bf16.msra.mxu0 0
  %1438 = vmatprep.subr.bf16.mxu0 0
  %1439 = vmatpush1.bf16.msra.mxu0 0
  %1440 = vmatprep.subr.bf16.mxu0 0
  %1441 = vmatpush1.bf16.msra.mxu0 0
  %1442 = vmatprep.subr.bf16.mxu0 0
  %1443 = vmatpush1.bf16.msra.mxu0 0
  %1444 = vmatprep.subr.bf16.mxu0 0
  %1445 = vmatpush1.bf16.msra.mxu0 0
  %1446 = vmatprep.subr.bf16.mxu0 0
  %1447 = vmatpush1.bf16.msra.mxu0 0
  %1448 = vmatprep.subr.bf16.mxu0 0
  %1449 = vmatpush1.bf16.msra.mxu0 0
  %1450 = vmatprep.subr.bf16.mxu0 0
  %1451 = vmatpush1.bf16.msra.mxu0 0
  %1452 = vmatprep.subr.bf16.mxu0 0
  %1453 = vmatpush1.bf16.msra.mxu0 0
  %1454 = vmatprep.subr.bf16.mxu0 0
  %1455 = vmatpush1.bf16.msra.mxu0 0
  %1456 = vmatprep.mubr.bf16.mxu0 0
  %1457 = vmatmul.mubr.bf16.gmra.mrb[0].mxu0 %v1078
  %v1458 = vpop.f32.mrb[0].mxu0
  %v1459 = vadd.f32 0.0, %v1458
  %v1460 = vpop.f32.mrb[0].mxu0
  %v1461 = vadd.f32 0.0, %v1460
  %v1462 = vpop.f32.mrb[0].mxu0
  %v1463 = vadd.f32 0.0, %v1462
  %v1464 = vpop.f32.mrb[0].mxu0
  %v1465 = vadd.f32 0.0, %v1464
  %1466 = vdwg.mxu0
  %1467 = vmatprep.subr.bf16.mxu0 %v843
  %1468 = vmatpush1.bf16.msra.mxu0 %v842
  %1469 = vmatprep.subr.bf16.mxu0 0
  %1470 = vmatpush1.bf16.msra.mxu0 0
  %1471 = vmatprep.subr.bf16.mxu0 0
  %1472 = vmatpush1.bf16.msra.mxu0 0
  %1473 = vmatprep.subr.bf16.mxu0 0
  %1474 = vmatpush1.bf16.msra.mxu0 0
  %1475 = vmatprep.subr.bf16.mxu0 0
  %1476 = vmatpush1.bf16.msra.mxu0 0
  %1477 = vmatprep.subr.bf16.mxu0 0
  %1478 = vmatpush1.bf16.msra.mxu0 0
  %1479 = vmatprep.subr.bf16.mxu0 0
  %1480 = vmatpush1.bf16.msra.mxu0 0
  %1481 = vmatprep.subr.bf16.mxu0 0
  %1482 = vmatpush1.bf16.msra.mxu0 0
  %1483 = vmatprep.subr.bf16.mxu0 0
  %1484 = vmatpush1.bf16.msra.mxu0 0
  %1485 = vmatprep.subr.bf16.mxu0 0
  %1486 = vmatpush1.bf16.msra.mxu0 0
  %1487 = vmatprep.subr.bf16.mxu0 0
  %1488 = vmatpush1.bf16.msra.mxu0 0
  %1489 = vmatprep.subr.bf16.mxu0 0
  %1490 = vmatpush1.bf16.msra.mxu0 0
  %1491 = vmatprep.subr.bf16.mxu0 0
  %1492 = vmatpush1.bf16.msra.mxu0 0
  %1493 = vmatprep.subr.bf16.mxu0 0
  %1494 = vmatpush1.bf16.msra.mxu0 0
  %1495 = vmatprep.subr.bf16.mxu0 0
  %1496 = vmatpush1.bf16.msra.mxu0 0
  %1497 = vmatprep.subr.bf16.mxu0 0
  %1498 = vmatpush1.bf16.msra.mxu0 0
  %1499 = vmatprep.mubr.bf16.mxu0 0
  %1500 = vmatmul.mubr.bf16.gmra.mrb[0].mxu0 %v1078
  %v1501 = vpop.f32.mrb[0].mxu0
  %v1502 = vadd.f32 0.0, %v1501
  %v1503 = vpop.f32.mrb[0].mxu0
  %v1504 = vadd.f32 0.0, %v1503
  %v1505 = vpop.f32.mrb[0].mxu0
  %v1506 = vadd.f32 0.0, %v1505
  %v1507 = vpop.f32.mrb[0].mxu0
  %v1508 = vadd.f32 0.0, %v1507
  %1509 = vdwg.mxu0
  %v1510 = vadd.f32 %v1115, %v1330
  %v1511 = vadd.f32 %v1117, %v1332
  %v1512 = vadd.f32 %v1158, %v1373
  %v1513 = vadd.f32 %v1160, %v1375
  %v1514 = vadd.f32 %v1201, %v1416
  %v1515 = vadd.f32 %v1203, %v1418
  %v1516 = vadd.f32 %v1244, %v1459
  %v1517 = vadd.f32 %v1246, %v1461
  %v1518 = vadd.f32 %v1287, %v1502
  %v1519 = vadd.f32 %v1289, %v1504
  %v1520 = vadd.f32 %v1119, %v1334
  %v1521 = vadd.f32 %v1121, %v1336
  %v1522 = vadd.f32 %v1162, %v1377
  %v1523 = vadd.f32 %v1164, %v1379
  %v1524 = vadd.f32 %v1205, %v1420
  %v1525 = vadd.f32 %v1207, %v1422
  %v1526 = vadd.f32 %v1248, %v1463
  %v1527 = vadd.f32 %v1250, %v1465
  %v1528 = vadd.f32 %v1291, %v1506
  %v1529 = vadd.f32 %v1293, %v1508
  %v1530 = vmul.f32 %v1510, %v1510
  %v1531 = vmul.f32 %v1511, %v1511
  %v1532 = vmul.f32 %v1520, %v1520
  %v1533 = vmul.f32 %v1521, %v1521
  %v1534 = vmul.f32 %v1512, %v1512
  %v1535 = vmul.f32 %v1513, %v1513
  %v1536 = vmul.f32 %v1522, %v1522
  %v1537 = vmul.f32 %v1523, %v1523
  %v1538 = vmul.f32 %v1510, %v1512
  %v1539 = vmul.f32 %v1511, %v1513
  %v1540 = vmul.f32 %v1520, %v1522
  %v1541 = vmul.f32 %v1521, %v1523
  %v1542 = vsub.f32 %v1514, %v1530
  %v1543 = vsub.f32 %v1515, %v1531
  %v1544 = vsub.f32 %v1524, %v1532
  %v1545 = vsub.f32 %v1525, %v1533
  %v1546 = vsub.f32 %v1516, %v1534
  %v1547 = vsub.f32 %v1517, %v1535
  %v1548 = vsub.f32 %v1526, %v1536
  %v1549 = vsub.f32 %v1527, %v1537
  %v1550 = vsub.f32 %v1518, %v1538
  %v1551 = vsub.f32 %v1519, %v1539
  %v1552 = vsub.f32 %v1528, %v1540
  %v1553 = vsub.f32 %v1529, %v1541
  %v1554 = vmul.f32 %v1538, 2.0
  %v1555 = vmul.f32 %v1539, 2.0
  %v1556 = vmul.f32 %v1540, 2.0
  %v1557 = vmul.f32 %v1541, 2.0
  %v1558 = vadd.f32 %v1554, 6.5025
  %v1559 = vadd.f32 %v1555, 6.5025
  %v1560 = vadd.f32 %v1556, 6.5025
  %v1561 = vadd.f32 %v1557, 6.5025
  %v1562 = vmul.f32 %v1550, 2.0
  %v1563 = vmul.f32 %v1551, 2.0
  %v1564 = vmul.f32 %v1552, 2.0
  %v1565 = vmul.f32 %v1553, 2.0
  %v1566 = vadd.f32 %v1562, 58.5225
  %v1567 = vadd.f32 %v1563, 58.5225
  %v1568 = vadd.f32 %v1564, 58.5225
  %v1569 = vadd.f32 %v1565, 58.5225
  %v1570 = vmul.f32 %v1558, %v1566
  %v1571 = vmul.f32 %v1559, %v1567
  %v1572 = vmul.f32 %v1560, %v1568
  %v1573 = vmul.f32 %v1561, %v1569
  %v1574 = vadd.f32 %v1530, %v1534
  %v1575 = vadd.f32 %v1531, %v1535
  %v1576 = vadd.f32 %v1532, %v1536
  %v1577 = vadd.f32 %v1533, %v1537
  %v1578 = vadd.f32 %v1574, 6.5025
  %v1579 = vadd.f32 %v1575, 6.5025
  %v1580 = vadd.f32 %v1576, 6.5025
  %v1581 = vadd.f32 %v1577, 6.5025
  %v1582 = vadd.f32 %v1542, %v1546
  %v1583 = vadd.f32 %v1543, %v1547
  %v1584 = vadd.f32 %v1544, %v1548
  %v1585 = vadd.f32 %v1545, %v1549
  %v1586 = vadd.f32 %v1582, 58.5225
  %v1587 = vadd.f32 %v1583, 58.5225
  %v1588 = vadd.f32 %v1584, 58.5225
  %v1589 = vadd.f32 %v1585, 58.5225
  %v1590 = vmul.f32 %v1578, %v1586
  %v1591 = vmul.f32 %v1579, %v1587
  %v1592 = vmul.f32 %v1580, %v1588
  %v1593 = vmul.f32 %v1581, %v1589
  %v1594 = vrcp.pop %v1590
  %v1595 = vrcp.pop %v1591
  %v1596 = vrcp.pop %v1592
  %v1597 = vrcp.pop %v1593
  %v1598 = vmul.f32 %v1590, %v1594
  %v1599 = vmul.f32 %v1591, %v1595
  %v1600 = vmul.f32 %v1592, %v1596
  %v1601 = vmul.f32 %v1593, %v1597
  %v1602 = vsub.f32 2.0, %v1598
  %v1603 = vsub.f32 2.0, %v1599
  %v1604 = vsub.f32 2.0, %v1600
  %v1605 = vsub.f32 2.0, %v1601
  %v1606 = vmul.f32 %v1594, %v1602
  %v1607 = vmul.f32 %v1595, %v1603
  %v1608 = vmul.f32 %v1596, %v1604
  %v1609 = vmul.f32 %v1597, %v1605
  %v1610 = vmul.f32 %v1570, %v1606
  %v1611 = vmul.f32 %v1571, %v1607
  %v1612 = vmul.f32 %v1572, %v1608
  %v1613 = vmul.f32 %v1573, %v1609
  %s1614 = smul.u32 0, 16
  %s1615 = ssub.s32 2, %s1614
  %v1616 = vld [vmem:[%s0] sm:$0xff]
  %v1617 = vld [vmem:[%s0 + $0x8] sm:$0xff]
  %v1618 = vld [vmem:[%s0 + $0x10] sm:$0xff]
  %v1619 = vld [vmem:[%s0 + $0x18] sm:$0xff]
  %v1620 = vstv %s1615
  %vm1621 = vcmp.lt.s32.totalorder %v1616, %v1620
  %vm1622 = vcmp.lt.s32.totalorder %v1617, %v1620
  %vm1623 = vcmp.lt.s32.totalorder %v1618, %v1620
  %vm1624 = vcmp.lt.s32.totalorder %v1619, %v1620
  %v1625 = vsel %vm1621, %v1610, 0.0
  %v1626 = vsel %vm1622, %v1611, 0.0
  %v1627 = vsel %vm1623, %v1612, 0.0
  %v1628 = vsel %vm1624, %v1613, 0.0
  %v1629 = vadd.f32 %v1625, %v1627
  %v1630 = vrot.slane %v1629, 4
  %v1631 = vadd.f32 %v1629, %v1630
  %v1632 = vrot.slane %v1631, 2
  %v1633 = vadd.f32 %v1631, %v1632
  %v1634 = vrot.slane %v1633, 1
  %v1635 = vadd.f32 %v1633, %v1634
  %v1636 = vadd.f32 %v1626, %v1628
  %v1637 = vrot.slane %v1636, 4
  %v1638 = vadd.f32 %v1636, %v1637
  %v1639 = vrot.slane %v1638, 2
  %v1640 = vadd.f32 %v1638, %v1639
  %v1641 = vrot.slane %v1640, 1
  %v1642 = vadd.f32 %v1640, %v1641
  %v1645 = vcombine.low %v1635, %v1642
  %v1647 = vunpack.c.l.s4 1966171168
  %v1648 = vunpack.c.0.s8 %v1647
  %v1649 = vlaneseq
  %v1650 = vshrl.u32 %v1649, 7
  %v1651 = vsub.s32 %v1648, %v1650
  %v1652 = vrot.slane %v1645, %v1651
  %v1654 = vunpack.c.l.s4 1966171168
  %v1655 = vunpack.c.0.s8 %v1654
  %v1656 = vlaneseq
  %v1657 = vshrl.u32 %v1656, 7
  %v1658 = vsub.s32 %v1655, %v1657
  %v1659 = vrot.slane %v1652, %v1658
  %v1661 = vlaneseq
  %vm1662 = vcmp.ge.s32.totalorder %v1661, 0
  %vm1663 = vcmp.lt.s32.totalorder %v1661, 256
  %vm1664 = vmand %vm1662, %vm1663
  %1665 = vst.msk [vmem:[%s7] sm:$0x3] %vm1664, %v1659
  // Predicated region
  $region30: #{norm_ssim_loss.1} parent=0 // pred_check
    _
  $region31: #{norm_ssim_loss.1} parent=0 // pred_check_branch
    %1667 = sbr.rel (0) target = $region33
  $region32: #{norm_ssim_loss.1} parent=0 // pred_region
    _
  $region33: #{norm_ssim_loss.1} parent=0 // pred_fallthru
    _
  // Predicated region
  $region34: #{norm_ssim_loss.1} parent=0 // pred_check
    _
  $region35: #{norm_ssim_loss.1} parent=0 // pred_check_branch
    %1669 = sbr.rel (0) target = $region37
  $region36: #{norm_ssim_loss.1} parent=0 // pred_region
    _
  $region37: #{norm_ssim_loss.1} parent=0 // pred_fallthru
    _

</llo_original>
